<compile_context>
chip_gen: v6e
topology: v6e:2x2x1
jax: 0.10.0
libtpu: 0.0.40
codegen_flags: <defaults>
</compile_context>

<pallas_src>
import jax
import jax.numpy as jnp
from jax import lax
from jax.experimental import pallas as pl
from jax.experimental.pallas import tpu as pltpu


def lstm_coxph_kernel(x_ref, w_ih_t_ref, w_hh_t_ref, w_exp_ref, out_ref,
                      hseq_scr):
    # x_ref:     (T, Bt, D)  f32  time-major input block (one batch tile)
    # w_ih_t_ref:(D, 4H)     f32  pre-transposed weight_ih_l0
    # w_hh_t_ref:(H, 4H)     f32  pre-transposed weight_hh_l0
    # w_exp_ref: (1, H)      f32  expert.weight
    # out_ref:   (1, T, Bt)  f32  risk score per (t, b) for this batch tile
    # hseq_scr:  (T, Bt, H)  f32  per-step hidden states (off dep-chain stash)
    T, Bt, D = x_ref.shape
    H = w_hh_t_ref.shape[0]

    # PyTorch: x[torch.isnan(x)] = 0
    x = x_ref[...]
    x = jnp.where(jnp.isnan(x), jnp.zeros_like(x), x)

    # One batched input projection for all timesteps (single MXU push, off the
    # sequential critical path). Kept vreg-resident — no VMEM round-trip.
    xg = jnp.dot(x.reshape(T * Bt, D), w_ih_t_ref[...],
                 preferred_element_type=jnp.float32).reshape(T, Bt, 4 * H)

    w_hh_t = w_hh_t_ref[...]                                  # (H, 4H)

    h = jnp.zeros((Bt, H), jnp.float32)
    c = jnp.zeros((Bt, H), jnp.float32)

    # T is a static block dim -> Python loop gives concrete step indices:
    # xg[t] is a static vreg slice, h/c stay vreg-resident across steps.
    for t in range(T):
        gates = xg[t] + jnp.dot(h, w_hh_t,
                                preferred_element_type=jnp.float32)  # (Bt, 4H)
        # PyTorch gate order: i, f, g, o
        i_g = jax.nn.sigmoid(gates[:, 0 * H:1 * H])
        f_g = jax.nn.sigmoid(gates[:, 1 * H:2 * H])
        g_g = jnp.tanh(gates[:, 2 * H:3 * H])
        o_g = jax.nn.sigmoid(gates[:, 3 * H:4 * H])

        c = f_g * c + i_g * g_g
        h = o_g * jnp.tanh(c)

        hseq_scr[t] = h            # store is off the recurrence dep-chain

    # ReLU6 + expert head for all (t, b) rows at once, single dense store.
    h_all = hseq_scr[...]                                     # (T, Bt, H)
    xrep = jnp.clip(h_all, 0.0, 6.0)
    w_exp = w_exp_ref[...][None, :, :]                        # (1, 1, H)
    risk = jnp.sum(xrep * w_exp, axis=-1)                     # (T, Bt)
    out_ref[...] = risk[None, :, :].astype(out_ref.dtype)     # (1, T, Bt)


def deep_recurrent_coxph_forward(x, w_ih, w_hh, w_expert, *, b_tile=8):
    """LSTM (bias=False) + ReLU6 + expert head on TPU via Pallas.

    Args:
      x:        (B, T, D) float32, may contain NaNs (padding).
      w_ih:     (4H, D)   float32, PyTorch weight_ih_l0.
      w_hh:     (4H, H)   float32, PyTorch weight_hh_l0.
      w_expert: (1, H)    float32, PyTorch expert.weight.
      b_tile:   batch tile (multiple of 8 sublanes).

    Returns:
      (B, T) float32 risk scores for every (b, t) position (mask not applied).
    """
    B, T, D = x.shape
    H = w_hh.shape[-1]
    assert w_ih.shape == (4 * H, D)
    assert w_expert.shape == (1, H)
    assert b_tile % 8 == 0

    x = x.astype(jnp.float32)
    n_blocks = (B + b_tile - 1) // b_tile
    B_pad = n_blocks * b_tile
    if B_pad != B:
        # Zero-pad extra batch rows (their outputs are sliced away below).
        x = jnp.concatenate(
            [x, jnp.zeros((B_pad - B, T, D), jnp.float32)], axis=0)

    # Wrapper-side layout plumbing (free): time-major x, pre-transposed weights.
    x_tm = jnp.transpose(x, (1, 0, 2))                        # (T, B_pad, D)
    w_ih_t = jnp.asarray(w_ih, jnp.float32).T                 # (D, 4H)
    w_hh_t = jnp.asarray(w_hh, jnp.float32).T                 # (H, 4H)
    w_exp = jnp.asarray(w_expert, jnp.float32)                # (1, H)

    grid_spec = pltpu.PrefetchScalarGridSpec(
        num_scalar_prefetch=0,
        grid=(n_blocks,),
        in_specs=[
            pl.BlockSpec((T, b_tile, D), lambda b: (0, b, 0)),     # x tile
            pl.BlockSpec((D, 4 * H), lambda b: (0, 0)),            # W_ih^T
            pl.BlockSpec((H, 4 * H), lambda b: (0, 0)),            # W_hh^T
            pl.BlockSpec((1, H), lambda b: (0, 0)),                # expert
        ],
        out_specs=pl.BlockSpec((1, T, b_tile), lambda b: (b, 0, 0)),
        scratch_shapes=[
            pltpu.VMEM((T, b_tile, H), jnp.float32),      # per-step h_t
        ],
    )

    out = pl.pallas_call(
        lstm_coxph_kernel,
        out_shape=jax.ShapeDtypeStruct((n_blocks, T, b_tile), jnp.float32),
        grid_spec=grid_spec,
        compiler_params=pltpu.CompilerParams(
            dimension_semantics=("parallel",)),
    )(x_tm, w_ih_t, w_hh_t, w_exp)

    # (n_blocks, T, b_tile) -> (B, T)
    risks_bt = jnp.transpose(out, (0, 2, 1)).reshape(B_pad, T)[:B]
    return risks_bt


def reference_forward(x, w_ih, w_hh, w_expert):
    """Pure-JAX reference matching the PyTorch module semantics ((B, T) risks)."""
    x = jnp.where(jnp.isnan(x), 0.0, x).astype(jnp.float32)
    B, T, D = x.shape
    H = w_hh.shape[-1]

    def cell(carry, x_t):
        h, c = carry
        gates = x_t @ w_ih.T + h @ w_hh.T
        i_g = jax.nn.sigmoid(gates[:, 0 * H:1 * H])
        f_g = jax.nn.sigmoid(gates[:, 1 * H:2 * H])
        g_g = jnp.tanh(gates[:, 2 * H:3 * H])
        o_g = jax.nn.sigmoid(gates[:, 3 * H:4 * H])
        c = f_g * c + i_g * g_g
        h = o_g * jnp.tanh(c)
        return (h, c), h

    init = (jnp.zeros((B, H), jnp.float32), jnp.zeros((B, H), jnp.float32))
    _, hs = lax.scan(cell, init, jnp.transpose(x, (1, 0, 2)))   # (T, B, H)
    hs = jnp.transpose(hs, (1, 0, 2))                           # (B, T, H)
    xrep = jnp.clip(hs, 0.0, 6.0)
    return jnp.einsum('bth,oh->bt', xrep, w_expert)             # (B, T)


if __name__ == "__main__":
    # Small shapes consistent with the module: batch=2, seq=8, inputdim=4, hidden=32.
    B, T, D, H = 2, 8, 4, 32

    key = jax.random.PRNGKey(0)
    kx, k1, k2, k3 = jax.random.split(key, 4)

    # Deterministic parameter init (PyTorch-style U(-1/sqrt(H), 1/sqrt(H))).
    bound = 1.0 / jnp.sqrt(jnp.float32(H))
    w_ih = jax.random.uniform(k1, (4 * H, D), jnp.float32, -bound, bound)
    w_hh = jax.random.uniform(k2, (4 * H, H), jnp.float32, -bound, bound)
    w_expert = jax.random.uniform(k3, (1, H), jnp.float32, -bound, bound)

    # Example input with NaN-padded timesteps (as the module expects).
    x = jax.random.normal(kx, (B, T, D), jnp.float32)
    x = x.at[0, T - 1, :].set(jnp.nan)   # padded timestep for batch 0
    x = x.at[1, T - 2:, :].set(jnp.nan)  # padded timesteps for batch 1

    # Kernel: risk score for every (b, t).
    risks_bt = deep_recurrent_coxph_forward(x, w_ih, w_hh, w_expert)
    risks_bt = jax.block_until_ready(risks_bt)
    assert risks_bt.shape == (B, T)

    # Check against the pure-JAX reference.
    ref_bt = reference_forward(x, w_ih, w_hh, w_expert)
    assert bool(jnp.allclose(risks_bt, ref_bt, rtol=1e-3, atol=1e-3))

    # Glue (eager, dynamic shape): inputmask = ~isnan(x[:, :, 0]).reshape(-1),
    # then select valid rows — mirrors xrep[inputmask] in the PyTorch forward.
    # TODO(synk): boolean masking has a dynamic output shape, so it stays outside the kernel.
    inputmask = ~jnp.isnan(x[:, :, 0]).reshape(-1)
    risks_valid = risks_bt.reshape(-1, 1)[inputmask]           # (n_valid, 1)
    risks_valid = jax.block_until_ready(risks_valid)

    assert risks_valid.shape == (int(inputmask.sum()), 1)
    assert not bool(jnp.any(jnp.isnan(risks_valid)))
    print("KERNEL_OK")
</pallas_src>

<mosaic_0001>
module attributes {stable_mosaic.version = 11 : i64} {
  func.func @lstm_coxph_kernel(%arg0: i32, %arg1: memref<8x8x4xf32, #tpu.memory_space<vmem>>, %arg2: memref<4x128xf32, #tpu.memory_space<vmem>>, %arg3: memref<32x128xf32, #tpu.memory_space<vmem>>, %arg4: memref<1x32xf32, #tpu.memory_space<vmem>>, %arg5: memref<1x8x8xf32, #tpu.memory_space<vmem>>, %arg6: memref<8x8x32xf32, #tpu.memory_space<vmem>>) attributes {dimension_semantics = [#tpu.dimension_semantics<parallel>], iteration_bounds = array<i64: 1>, scalar_prefetch = 0 : i64, scratch_operands = 1 : i64, tpu.core_type = #tpu.core_type<tc>, window_params = [{transform_indices = @transform_0, window_bounds = array<i64: 8, 8, 4>}, {pipeline_mode = #tpu.pipeline_mode<synchronous>, transform_indices = @transform_1, window_bounds = array<i64: 4, 128>}, {pipeline_mode = #tpu.pipeline_mode<synchronous>, transform_indices = @transform_2, window_bounds = array<i64: 32, 128>}, {pipeline_mode = #tpu.pipeline_mode<synchronous>, transform_indices = @transform_3, window_bounds = array<i64: 1, 32>}, {transform_indices = @transform_4, window_bounds = array<i64: 1, 8, 8>}]} {
    %c0 = arith.constant 0 : index
    %c0_0 = arith.constant 0 : index
    %c0_1 = arith.constant 0 : index
    %0 = vector.load %arg1[%c0, %c0_0, %c0_1] : memref<8x8x4xf32, #tpu.memory_space<vmem>>, vector<8x8x4xf32>
    %1 = arith.cmpf one, %0, %0 : vector<8x8x4xf32>
    %cst = arith.constant 0.000000e+00 : f32
    %2 = vector.broadcast %cst : f32 to vector<8x8x4xf32>
    %3 = arith.select %1, %2, %0 : vector<8x8x4xi1>, vector<8x8x4xf32>
    %4 = vector.shape_cast %3 : vector<8x8x4xf32> to vector<64x4xf32>
    %c0_2 = arith.constant 0 : index
    %c0_3 = arith.constant 0 : index
    %5 = vector.load %arg2[%c0_2, %c0_3] : memref<4x128xf32, #tpu.memory_space<vmem>>, vector<4x128xf32>
    %cst_4 = arith.constant dense<0.000000e+00> : vector<64x128xf32>
    %6 = tpu.matmul %4, %5, %cst_4 {dimension_numbers = #tpu.dot_dimension_numbers<[1], [0], [0], [1], [0, 0, 1, 1], [], []>} : vector<64x4xf32>, vector<4x128xf32>, vector<64x128xf32> -> vector<64x128xf32>
    %7 = vector.shape_cast %6 : vector<64x128xf32> to vector<8x8x128xf32>
    %c0_5 = arith.constant 0 : index
    %c0_6 = arith.constant 0 : index
    %8 = vector.load %arg3[%c0_5, %c0_6] : memref<32x128xf32, #tpu.memory_space<vmem>>, vector<32x128xf32>
    %cst_7 = arith.constant 0.000000e+00 : f32
    %9 = vector.broadcast %cst_7 : f32 to vector<8x32xf32>
    %cst_8 = arith.constant 0.000000e+00 : f32
    %10 = vector.broadcast %cst_8 : f32 to vector<8x32xf32>
    %11 = vector.extract_strided_slice %7 {offsets = [0, 0, 0], sizes = [1, 8, 128], strides = [1, 1, 1]} : vector<8x8x128xf32> to vector<1x8x128xf32>
    %12 = vector.shape_cast %11 : vector<1x8x128xf32> to vector<8x128xf32>
    %cst_9 = arith.constant dense<0.000000e+00> : vector<8x128xf32>
    %13 = tpu.matmul %9, %8, %cst_9 {dimension_numbers = #tpu.dot_dimension_numbers<[1], [0], [0], [1], [0, 0, 1, 1], [], []>} : vector<8x32xf32>, vector<32x128xf32>, vector<8x128xf32> -> vector<8x128xf32>
    %14 = arith.addf %12, %13 : vector<8x128xf32>
    %15 = vector.extract_strided_slice %14 {offsets = [0, 0], sizes = [8, 32], strides = [1, 1]} : vector<8x128xf32> to vector<8x32xf32>
    %16 = arith.negf %15 : vector<8x32xf32>
    %17 = math.exp %16 : vector<8x32xf32>
    %cst_10 = arith.constant 1.000000e+00 : f32
    %18 = vector.broadcast %cst_10 : f32 to vector<8x32xf32>
    %19 = arith.addf %18, %17 : vector<8x32xf32>
    %20 = arith.divf %18, %19 : vector<8x32xf32>
    %21 = vector.extract_strided_slice %14 {offsets = [0, 32], sizes = [8, 32], strides = [1, 1]} : vector<8x128xf32> to vector<8x32xf32>
    %22 = arith.negf %21 : vector<8x32xf32>
    %23 = math.exp %22 : vector<8x32xf32>
    %cst_11 = arith.constant 1.000000e+00 : f32
    %24 = vector.broadcast %cst_11 : f32 to vector<8x32xf32>
    %25 = arith.addf %24, %23 : vector<8x32xf32>
    %26 = arith.divf %24, %25 : vector<8x32xf32>
    %27 = vector.extract_strided_slice %14 {offsets = [0, 64], sizes = [8, 32], strides = [1, 1]} : vector<8x128xf32> to vector<8x32xf32>
    %28 = math.tanh %27 : vector<8x32xf32>
    %29 = vector.extract_strided_slice %14 {offsets = [0, 96], sizes = [8, 32], strides = [1, 1]} : vector<8x128xf32> to vector<8x32xf32>
    %30 = arith.negf %29 : vector<8x32xf32>
    %31 = math.exp %30 : vector<8x32xf32>
    %cst_12 = arith.constant 1.000000e+00 : f32
    %32 = vector.broadcast %cst_12 : f32 to vector<8x32xf32>
    %33 = arith.addf %32, %31 : vector<8x32xf32>
    %34 = arith.divf %32, %33 : vector<8x32xf32>
    %35 = arith.mulf %26, %10 : vector<8x32xf32>
    %36 = arith.mulf %20, %28 : vector<8x32xf32>
    %37 = arith.addf %35, %36 : vector<8x32xf32>
    %38 = math.tanh %37 : vector<8x32xf32>
    %39 = arith.mulf %34, %38 : vector<8x32xf32>
    %c0_13 = arith.constant 0 : index
    %c0_14 = arith.constant 0 : index
    %c0_15 = arith.constant 0 : index
    %40 = vector.load %arg6[%c0_13, %c0_14, %c0_15] : memref<8x8x32xf32, #tpu.memory_space<vmem>>, vector<1x8x32xf32>
    %41 = vector.shape_cast %40 : vector<1x8x32xf32> to vector<8x32xf32>
    %42 = vector.shape_cast %39 : vector<8x32xf32> to vector<1x8x32xf32>
    tpu.vector_store %arg6[%c0_13, %c0_14, %c0_15], %42 {strides = array<i32>} : memref<8x8x32xf32, #tpu.memory_space<vmem>>, vector<1x8x32xf32>,
    %43 = vector.extract_strided_slice %7 {offsets = [1, 0, 0], sizes = [1, 8, 128], strides = [1, 1, 1]} : vector<8x8x128xf32> to vector<1x8x128xf32>
    %44 = vector.shape_cast %43 : vector<1x8x128xf32> to vector<8x128xf32>
    %cst_16 = arith.constant dense<0.000000e+00> : vector<8x128xf32>
    %45 = tpu.matmul %39, %8, %cst_16 {dimension_numbers = #tpu.dot_dimension_numbers<[1], [0], [0], [1], [0, 0, 1, 1], [], []>} : vector<8x32xf32>, vector<32x128xf32>, vector<8x128xf32> -> vector<8x128xf32>
    %46 = arith.addf %44, %45 : vector<8x128xf32>
    %47 = vector.extract_strided_slice %46 {offsets = [0, 0], sizes = [8, 32], strides = [1, 1]} : vector<8x128xf32> to vector<8x32xf32>
    %48 = arith.negf %47 : vector<8x32xf32>
    %49 = math.exp %48 : vector<8x32xf32>
    %cst_17 = arith.constant 1.000000e+00 : f32
    %50 = vector.broadcast %cst_17 : f32 to vector<8x32xf32>
    %51 = arith.addf %50, %49 : vector<8x32xf32>
    %52 = arith.divf %50, %51 : vector<8x32xf32>
    %53 = vector.extract_strided_slice %46 {offsets = [0, 32], sizes = [8, 32], strides = [1, 1]} : vector<8x128xf32> to vector<8x32xf32>
    %54 = arith.negf %53 : vector<8x32xf32>
    %55 = math.exp %54 : vector<8x32xf32>
    %cst_18 = arith.constant 1.000000e+00 : f32
    %56 = vector.broadcast %cst_18 : f32 to vector<8x32xf32>
    %57 = arith.addf %56, %55 : vector<8x32xf32>
    %58 = arith.divf %56, %57 : vector<8x32xf32>
    %59 = vector.extract_strided_slice %46 {offsets = [0, 64], sizes = [8, 32], strides = [1, 1]} : vector<8x128xf32> to vector<8x32xf32>
    %60 = math.tanh %59 : vector<8x32xf32>
    %61 = vector.extract_strided_slice %46 {offsets = [0, 96], sizes = [8, 32], strides = [1, 1]} : vector<8x128xf32> to vector<8x32xf32>
    %62 = arith.negf %61 : vector<8x32xf32>
    %63 = math.exp %62 : vector<8x32xf32>
    %cst_19 = arith.constant 1.000000e+00 : f32
    %64 = vector.broadcast %cst_19 : f32 to vector<8x32xf32>
    %65 = arith.addf %64, %63 : vector<8x32xf32>
    %66 = arith.divf %64, %65 : vector<8x32xf32>
    %67 = arith.mulf %58, %37 : vector<8x32xf32>
    %68 = arith.mulf %52, %60 : vector<8x32xf32>
    %69 = arith.addf %67, %68 : vector<8x32xf32>
    %70 = math.tanh %69 : vector<8x32xf32>
    %71 = arith.mulf %66, %70 : vector<8x32xf32>
    %c1 = arith.constant 1 : index
    %c0_20 = arith.constant 0 : index
    %c0_21 = arith.constant 0 : index
    %72 = vector.load %arg6[%c1, %c0_20, %c0_21] : memref<8x8x32xf32, #tpu.memory_space<vmem>>, vector<1x8x32xf32>
    %73 = vector.shape_cast %72 : vector<1x8x32xf32> to vector<8x32xf32>
    %74 = vector.shape_cast %71 : vector<8x32xf32> to vector<1x8x32xf32>
    tpu.vector_store %arg6[%c1, %c0_20, %c0_21], %74 {strides = array<i32>} : memref<8x8x32xf32, #tpu.memory_space<vmem>>, vector<1x8x32xf32>,
    %75 = vector.extract_strided_slice %7 {offsets = [2, 0, 0], sizes = [1, 8, 128], strides = [1, 1, 1]} : vector<8x8x128xf32> to vector<1x8x128xf32>
    %76 = vector.shape_cast %75 : vector<1x8x128xf32> to vector<8x128xf32>
    %cst_22 = arith.constant dense<0.000000e+00> : vector<8x128xf32>
    %77 = tpu.matmul %71, %8, %cst_22 {dimension_numbers = #tpu.dot_dimension_numbers<[1], [0], [0], [1], [0, 0, 1, 1], [], []>} : vector<8x32xf32>, vector<32x128xf32>, vector<8x128xf32> -> vector<8x128xf32>
    %78 = arith.addf %76, %77 : vector<8x128xf32>
    %79 = vector.extract_strided_slice %78 {offsets = [0, 0], sizes = [8, 32], strides = [1, 1]} : vector<8x128xf32> to vector<8x32xf32>
    %80 = arith.negf %79 : vector<8x32xf32>
    %81 = math.exp %80 : vector<8x32xf32>
    %cst_23 = arith.constant 1.000000e+00 : f32
    %82 = vector.broadcast %cst_23 : f32 to vector<8x32xf32>
    %83 = arith.addf %82, %81 : vector<8x32xf32>
    %84 = arith.divf %82, %83 : vector<8x32xf32>
    %85 = vector.extract_strided_slice %78 {offsets = [0, 32], sizes = [8, 32], strides = [1, 1]} : vector<8x128xf32> to vector<8x32xf32>
    %86 = arith.negf %85 : vector<8x32xf32>
    %87 = math.exp %86 : vector<8x32xf32>
    %cst_24 = arith.constant 1.000000e+00 : f32
    %88 = vector.broadcast %cst_24 : f32 to vector<8x32xf32>
    %89 = arith.addf %88, %87 : vector<8x32xf32>
    %90 = arith.divf %88, %89 : vector<8x32xf32>
    %91 = vector.extract_strided_slice %78 {offsets = [0, 64], sizes = [8, 32], strides = [1, 1]} : vector<8x128xf32> to vector<8x32xf32>
    %92 = math.tanh %91 : vector<8x32xf32>
    %93 = vector.extract_strided_slice %78 {offsets = [0, 96], sizes = [8, 32], strides = [1, 1]} : vector<8x128xf32> to vector<8x32xf32>
    %94 = arith.negf %93 : vector<8x32xf32>
    %95 = math.exp %94 : vector<8x32xf32>
    %cst_25 = arith.constant 1.000000e+00 : f32
    %96 = vector.broadcast %cst_25 : f32 to vector<8x32xf32>
    %97 = arith.addf %96, %95 : vector<8x32xf32>
    %98 = arith.divf %96, %97 : vector<8x32xf32>
    %99 = arith.mulf %90, %69 : vector<8x32xf32>
    %100 = arith.mulf %84, %92 : vector<8x32xf32>
    %101 = arith.addf %99, %100 : vector<8x32xf32>
    %102 = math.tanh %101 : vector<8x32xf32>
    %103 = arith.mulf %98, %102 : vector<8x32xf32>
    %c2 = arith.constant 2 : index
    %c0_26 = arith.constant 0 : index
    %c0_27 = arith.constant 0 : index
    %104 = vector.load %arg6[%c2, %c0_26, %c0_27] : memref<8x8x32xf32, #tpu.memory_space<vmem>>, vector<1x8x32xf32>
    %105 = vector.shape_cast %104 : vector<1x8x32xf32> to vector<8x32xf32>
    %106 = vector.shape_cast %103 : vector<8x32xf32> to vector<1x8x32xf32>
    tpu.vector_store %arg6[%c2, %c0_26, %c0_27], %106 {strides = array<i32>} : memref<8x8x32xf32, #tpu.memory_space<vmem>>, vector<1x8x32xf32>,
    %107 = vector.extract_strided_slice %7 {offsets = [3, 0, 0], sizes = [1, 8, 128], strides = [1, 1, 1]} : vector<8x8x128xf32> to vector<1x8x128xf32>
    %108 = vector.shape_cast %107 : vector<1x8x128xf32> to vector<8x128xf32>
    %cst_28 = arith.constant dense<0.000000e+00> : vector<8x128xf32>
    %109 = tpu.matmul %103, %8, %cst_28 {dimension_numbers = #tpu.dot_dimension_numbers<[1], [0], [0], [1], [0, 0, 1, 1], [], []>} : vector<8x32xf32>, vector<32x128xf32>, vector<8x128xf32> -> vector<8x128xf32>
    %110 = arith.addf %108, %109 : vector<8x128xf32>
    %111 = vector.extract_strided_slice %110 {offsets = [0, 0], sizes = [8, 32], strides = [1, 1]} : vector<8x128xf32> to vector<8x32xf32>
    %112 = arith.negf %111 : vector<8x32xf32>
    %113 = math.exp %112 : vector<8x32xf32>
    %cst_29 = arith.constant 1.000000e+00 : f32
    %114 = vector.broadcast %cst_29 : f32 to vector<8x32xf32>
    %115 = arith.addf %114, %113 : vector<8x32xf32>
    %116 = arith.divf %114, %115 : vector<8x32xf32>
    %117 = vector.extract_strided_slice %110 {offsets = [0, 32], sizes = [8, 32], strides = [1, 1]} : vector<8x128xf32> to vector<8x32xf32>
    %118 = arith.negf %117 : vector<8x32xf32>
    %119 = math.exp %118 : vector<8x32xf32>
    %cst_30 = arith.constant 1.000000e+00 : f32
    %120 = vector.broadcast %cst_30 : f32 to vector<8x32xf32>
    %121 = arith.addf %120, %119 : vector<8x32xf32>
    %122 = arith.divf %120, %121 : vector<8x32xf32>
    %123 = vector.extract_strided_slice %110 {offsets = [0, 64], sizes = [8, 32], strides = [1, 1]} : vector<8x128xf32> to vector<8x32xf32>
    %124 = math.tanh %123 : vector<8x32xf32>
    %125 = vector.extract_strided_slice %110 {offsets = [0, 96], sizes = [8, 32], strides = [1, 1]} : vector<8x128xf32> to vector<8x32xf32>
    %126 = arith.negf %125 : vector<8x32xf32>
    %127 = math.exp %126 : vector<8x32xf32>
    %cst_31 = arith.constant 1.000000e+00 : f32
    %128 = vector.broadcast %cst_31 : f32 to vector<8x32xf32>
    %129 = arith.addf %128, %127 : vector<8x32xf32>
    %130 = arith.divf %128, %129 : vector<8x32xf32>
    %131 = arith.mulf %122, %101 : vector<8x32xf32>
    %132 = arith.mulf %116, %124 : vector<8x32xf32>
    %133 = arith.addf %131, %132 : vector<8x32xf32>
    %134 = math.tanh %133 : vector<8x32xf32>
    %135 = arith.mulf %130, %134 : vector<8x32xf32>
    %c3 = arith.constant 3 : index
    %c0_32 = arith.constant 0 : index
    %c0_33 = arith.constant 0 : index
    %136 = vector.load %arg6[%c3, %c0_32, %c0_33] : memref<8x8x32xf32, #tpu.memory_space<vmem>>, vector<1x8x32xf32>
    %137 = vector.shape_cast %136 : vector<1x8x32xf32> to vector<8x32xf32>
    %138 = vector.shape_cast %135 : vector<8x32xf32> to vector<1x8x32xf32>
    tpu.vector_store %arg6[%c3, %c0_32, %c0_33], %138 {strides = array<i32>} : memref<8x8x32xf32, #tpu.memory_space<vmem>>, vector<1x8x32xf32>,
    %139 = vector.extract_strided_slice %7 {offsets = [4, 0, 0], sizes = [1, 8, 128], strides = [1, 1, 1]} : vector<8x8x128xf32> to vector<1x8x128xf32>
    %140 = vector.shape_cast %139 : vector<1x8x128xf32> to vector<8x128xf32>
    %cst_34 = arith.constant dense<0.000000e+00> : vector<8x128xf32>
    %141 = tpu.matmul %135, %8, %cst_34 {dimension_numbers = #tpu.dot_dimension_numbers<[1], [0], [0], [1], [0, 0, 1, 1], [], []>} : vector<8x32xf32>, vector<32x128xf32>, vector<8x128xf32> -> vector<8x128xf32>
    %142 = arith.addf %140, %141 : vector<8x128xf32>
    %143 = vector.extract_strided_slice %142 {offsets = [0, 0], sizes = [8, 32], strides = [1, 1]} : vector<8x128xf32> to vector<8x32xf32>
    %144 = arith.negf %143 : vector<8x32xf32>
    %145 = math.exp %144 : vector<8x32xf32>
    %cst_35 = arith.constant 1.000000e+00 : f32
    %146 = vector.broadcast %cst_35 : f32 to vector<8x32xf32>
    %147 = arith.addf %146, %145 : vector<8x32xf32>
    %148 = arith.divf %146, %147 : vector<8x32xf32>
    %149 = vector.extract_strided_slice %142 {offsets = [0, 32], sizes = [8, 32], strides = [1, 1]} : vector<8x128xf32> to vector<8x32xf32>
    %150 = arith.negf %149 : vector<8x32xf32>
    %151 = math.exp %150 : vector<8x32xf32>
    %cst_36 = arith.constant 1.000000e+00 : f32
    %152 = vector.broadcast %cst_36 : f32 to vector<8x32xf32>
    %153 = arith.addf %152, %151 : vector<8x32xf32>
    %154 = arith.divf %152, %153 : vector<8x32xf32>
    %155 = vector.extract_strided_slice %142 {offsets = [0, 64], sizes = [8, 32], strides = [1, 1]} : vector<8x128xf32> to vector<8x32xf32>
    %156 = math.tanh %155 : vector<8x32xf32>
    %157 = vector.extract_strided_slice %142 {offsets = [0, 96], sizes = [8, 32], strides = [1, 1]} : vector<8x128xf32> to vector<8x32xf32>
    %158 = arith.negf %157 : vector<8x32xf32>
    %159 = math.exp %158 : vector<8x32xf32>
    %cst_37 = arith.constant 1.000000e+00 : f32
    %160 = vector.broadcast %cst_37 : f32 to vector<8x32xf32>
    %161 = arith.addf %160, %159 : vector<8x32xf32>
    %162 = arith.divf %160, %161 : vector<8x32xf32>
    %163 = arith.mulf %154, %133 : vector<8x32xf32>
    %164 = arith.mulf %148, %156 : vector<8x32xf32>
    %165 = arith.addf %163, %164 : vector<8x32xf32>
    %166 = math.tanh %165 : vector<8x32xf32>
    %167 = arith.mulf %162, %166 : vector<8x32xf32>
    %c4 = arith.constant 4 : index
    %c0_38 = arith.constant 0 : index
    %c0_39 = arith.constant 0 : index
    %168 = vector.load %arg6[%c4, %c0_38, %c0_39] : memref<8x8x32xf32, #tpu.memory_space<vmem>>, vector<1x8x32xf32>
    %169 = vector.shape_cast %168 : vector<1x8x32xf32> to vector<8x32xf32>
    %170 = vector.shape_cast %167 : vector<8x32xf32> to vector<1x8x32xf32>
    tpu.vector_store %arg6[%c4, %c0_38, %c0_39], %170 {strides = array<i32>} : memref<8x8x32xf32, #tpu.memory_space<vmem>>, vector<1x8x32xf32>,
    %171 = vector.extract_strided_slice %7 {offsets = [5, 0, 0], sizes = [1, 8, 128], strides = [1, 1, 1]} : vector<8x8x128xf32> to vector<1x8x128xf32>
    %172 = vector.shape_cast %171 : vector<1x8x128xf32> to vector<8x128xf32>
    %cst_40 = arith.constant dense<0.000000e+00> : vector<8x128xf32>
    %173 = tpu.matmul %167, %8, %cst_40 {dimension_numbers = #tpu.dot_dimension_numbers<[1], [0], [0], [1], [0, 0, 1, 1], [], []>} : vector<8x32xf32>, vector<32x128xf32>, vector<8x128xf32> -> vector<8x128xf32>
    %174 = arith.addf %172, %173 : vector<8x128xf32>
    %175 = vector.extract_strided_slice %174 {offsets = [0, 0], sizes = [8, 32], strides = [1, 1]} : vector<8x128xf32> to vector<8x32xf32>
    %176 = arith.negf %175 : vector<8x32xf32>
    %177 = math.exp %176 : vector<8x32xf32>
    %cst_41 = arith.constant 1.000000e+00 : f32
    %178 = vector.broadcast %cst_41 : f32 to vector<8x32xf32>
    %179 = arith.addf %178, %177 : vector<8x32xf32>
    %180 = arith.divf %178, %179 : vector<8x32xf32>
    %181 = vector.extract_strided_slice %174 {offsets = [0, 32], sizes = [8, 32], strides = [1, 1]} : vector<8x128xf32> to vector<8x32xf32>
    %182 = arith.negf %181 : vector<8x32xf32>
    %183 = math.exp %182 : vector<8x32xf32>
    %cst_42 = arith.constant 1.000000e+00 : f32
    %184 = vector.broadcast %cst_42 : f32 to vector<8x32xf32>
    %185 = arith.addf %184, %183 : vector<8x32xf32>
    %186 = arith.divf %184, %185 : vector<8x32xf32>
    %187 = vector.extract_strided_slice %174 {offsets = [0, 64], sizes = [8, 32], strides = [1, 1]} : vector<8x128xf32> to vector<8x32xf32>
    %188 = math.tanh %187 : vector<8x32xf32>
    %189 = vector.extract_strided_slice %174 {offsets = [0, 96], sizes = [8, 32], strides = [1, 1]} : vector<8x128xf32> to vector<8x32xf32>
    %190 = arith.negf %189 : vector<8x32xf32>
    %191 = math.exp %190 : vector<8x32xf32>
    %cst_43 = arith.constant 1.000000e+00 : f32
    %192 = vector.broadcast %cst_43 : f32 to vector<8x32xf32>
    %193 = arith.addf %192, %191 : vector<8x32xf32>
    %194 = arith.divf %192, %193 : vector<8x32xf32>
    %195 = arith.mulf %186, %165 : vector<8x32xf32>
    %196 = arith.mulf %180, %188 : vector<8x32xf32>
    %197 = arith.addf %195, %196 : vector<8x32xf32>
    %198 = math.tanh %197 : vector<8x32xf32>
    %199 = arith.mulf %194, %198 : vector<8x32xf32>
    %c5 = arith.constant 5 : index
    %c0_44 = arith.constant 0 : index
    %c0_45 = arith.constant 0 : index
    %200 = vector.load %arg6[%c5, %c0_44, %c0_45] : memref<8x8x32xf32, #tpu.memory_space<vmem>>, vector<1x8x32xf32>
    %201 = vector.shape_cast %200 : vector<1x8x32xf32> to vector<8x32xf32>
    %202 = vector.shape_cast %199 : vector<8x32xf32> to vector<1x8x32xf32>
    tpu.vector_store %arg6[%c5, %c0_44, %c0_45], %202 {strides = array<i32>} : memref<8x8x32xf32, #tpu.memory_space<vmem>>, vector<1x8x32xf32>,
    %203 = vector.extract_strided_slice %7 {offsets = [6, 0, 0], sizes = [1, 8, 128], strides = [1, 1, 1]} : vector<8x8x128xf32> to vector<1x8x128xf32>
    %204 = vector.shape_cast %203 : vector<1x8x128xf32> to vector<8x128xf32>
    %cst_46 = arith.constant dense<0.000000e+00> : vector<8x128xf32>
    %205 = tpu.matmul %199, %8, %cst_46 {dimension_numbers = #tpu.dot_dimension_numbers<[1], [0], [0], [1], [0, 0, 1, 1], [], []>} : vector<8x32xf32>, vector<32x128xf32>, vector<8x128xf32> -> vector<8x128xf32>
    %206 = arith.addf %204, %205 : vector<8x128xf32>
    %207 = vector.extract_strided_slice %206 {offsets = [0, 0], sizes = [8, 32], strides = [1, 1]} : vector<8x128xf32> to vector<8x32xf32>
    %208 = arith.negf %207 : vector<8x32xf32>
    %209 = math.exp %208 : vector<8x32xf32>
    %cst_47 = arith.constant 1.000000e+00 : f32
    %210 = vector.broadcast %cst_47 : f32 to vector<8x32xf32>
    %211 = arith.addf %210, %209 : vector<8x32xf32>
    %212 = arith.divf %210, %211 : vector<8x32xf32>
    %213 = vector.extract_strided_slice %206 {offsets = [0, 32], sizes = [8, 32], strides = [1, 1]} : vector<8x128xf32> to vector<8x32xf32>
    %214 = arith.negf %213 : vector<8x32xf32>
    %215 = math.exp %214 : vector<8x32xf32>
    %cst_48 = arith.constant 1.000000e+00 : f32
    %216 = vector.broadcast %cst_48 : f32 to vector<8x32xf32>
    %217 = arith.addf %216, %215 : vector<8x32xf32>
    %218 = arith.divf %216, %217 : vector<8x32xf32>
    %219 = vector.extract_strided_slice %206 {offsets = [0, 64], sizes = [8, 32], strides = [1, 1]} : vector<8x128xf32> to vector<8x32xf32>
    %220 = math.tanh %219 : vector<8x32xf32>
    %221 = vector.extract_strided_slice %206 {offsets = [0, 96], sizes = [8, 32], strides = [1, 1]} : vector<8x128xf32> to vector<8x32xf32>
    %222 = arith.negf %221 : vector<8x32xf32>
    %223 = math.exp %222 : vector<8x32xf32>
    %cst_49 = arith.constant 1.000000e+00 : f32
    %224 = vector.broadcast %cst_49 : f32 to vector<8x32xf32>
    %225 = arith.addf %224, %223 : vector<8x32xf32>
    %226 = arith.divf %224, %225 : vector<8x32xf32>
    %227 = arith.mulf %218, %197 : vector<8x32xf32>
    %228 = arith.mulf %212, %220 : vector<8x32xf32>
    %229 = arith.addf %227, %228 : vector<8x32xf32>
    %230 = math.tanh %229 : vector<8x32xf32>
    %231 = arith.mulf %226, %230 : vector<8x32xf32>
    %c6 = arith.constant 6 : index
    %c0_50 = arith.constant 0 : index
    %c0_51 = arith.constant 0 : index
    %232 = vector.load %arg6[%c6, %c0_50, %c0_51] : memref<8x8x32xf32, #tpu.memory_space<vmem>>, vector<1x8x32xf32>
    %233 = vector.shape_cast %232 : vector<1x8x32xf32> to vector<8x32xf32>
    %234 = vector.shape_cast %231 : vector<8x32xf32> to vector<1x8x32xf32>
    tpu.vector_store %arg6[%c6, %c0_50, %c0_51], %234 {strides = array<i32>} : memref<8x8x32xf32, #tpu.memory_space<vmem>>, vector<1x8x32xf32>,
    %235 = vector.extract_strided_slice %7 {offsets = [7, 0, 0], sizes = [1, 8, 128], strides = [1, 1, 1]} : vector<8x8x128xf32> to vector<1x8x128xf32>
    %236 = vector.shape_cast %235 : vector<1x8x128xf32> to vector<8x128xf32>
    %cst_52 = arith.constant dense<0.000000e+00> : vector<8x128xf32>
    %237 = tpu.matmul %231, %8, %cst_52 {dimension_numbers = #tpu.dot_dimension_numbers<[1], [0], [0], [1], [0, 0, 1, 1], [], []>} : vector<8x32xf32>, vector<32x128xf32>, vector<8x128xf32> -> vector<8x128xf32>
    %238 = arith.addf %236, %237 : vector<8x128xf32>
    %239 = vector.extract_strided_slice %238 {offsets = [0, 0], sizes = [8, 32], strides = [1, 1]} : vector<8x128xf32> to vector<8x32xf32>
    %240 = arith.negf %239 : vector<8x32xf32>
    %241 = math.exp %240 : vector<8x32xf32>
    %cst_53 = arith.constant 1.000000e+00 : f32
    %242 = vector.broadcast %cst_53 : f32 to vector<8x32xf32>
    %243 = arith.addf %242, %241 : vector<8x32xf32>
    %244 = arith.divf %242, %243 : vector<8x32xf32>
    %245 = vector.extract_strided_slice %238 {offsets = [0, 32], sizes = [8, 32], strides = [1, 1]} : vector<8x128xf32> to vector<8x32xf32>
    %246 = arith.negf %245 : vector<8x32xf32>
    %247 = math.exp %246 : vector<8x32xf32>
    %cst_54 = arith.constant 1.000000e+00 : f32
    %248 = vector.broadcast %cst_54 : f32 to vector<8x32xf32>
    %249 = arith.addf %248, %247 : vector<8x32xf32>
    %250 = arith.divf %248, %249 : vector<8x32xf32>
    %251 = vector.extract_strided_slice %238 {offsets = [0, 64], sizes = [8, 32], strides = [1, 1]} : vector<8x128xf32> to vector<8x32xf32>
    %252 = math.tanh %251 : vector<8x32xf32>
    %253 = vector.extract_strided_slice %238 {offsets = [0, 96], sizes = [8, 32], strides = [1, 1]} : vector<8x128xf32> to vector<8x32xf32>
    %254 = arith.negf %253 : vector<8x32xf32>
    %255 = math.exp %254 : vector<8x32xf32>
    %cst_55 = arith.constant 1.000000e+00 : f32
    %256 = vector.broadcast %cst_55 : f32 to vector<8x32xf32>
    %257 = arith.addf %256, %255 : vector<8x32xf32>
    %258 = arith.divf %256, %257 : vector<8x32xf32>
    %259 = arith.mulf %250, %229 : vector<8x32xf32>
    %260 = arith.mulf %244, %252 : vector<8x32xf32>
    %261 = arith.addf %259, %260 : vector<8x32xf32>
    %262 = math.tanh %261 : vector<8x32xf32>
    %263 = arith.mulf %258, %262 : vector<8x32xf32>
    %c7 = arith.constant 7 : index
    %c0_56 = arith.constant 0 : index
    %c0_57 = arith.constant 0 : index
    %264 = vector.load %arg6[%c7, %c0_56, %c0_57] : memref<8x8x32xf32, #tpu.memory_space<vmem>>, vector<1x8x32xf32>
    %265 = vector.shape_cast %264 : vector<1x8x32xf32> to vector<8x32xf32>
    %266 = vector.shape_cast %263 : vector<8x32xf32> to vector<1x8x32xf32>
    tpu.vector_store %arg6[%c7, %c0_56, %c0_57], %266 {strides = array<i32>} : memref<8x8x32xf32, #tpu.memory_space<vmem>>, vector<1x8x32xf32>,
    %c0_58 = arith.constant 0 : index
    %c0_59 = arith.constant 0 : index
    %c0_60 = arith.constant 0 : index
    %267 = vector.load %arg6[%c0_58, %c0_59, %c0_60] : memref<8x8x32xf32, #tpu.memory_space<vmem>>, vector<8x8x32xf32>
    %cst_61 = arith.constant 0.000000e+00 : f32
    %cst_62 = arith.constant 6.000000e+00 : f32
    %268 = vector.broadcast %cst_61 : f32 to vector<8x8x32xf32>
    %269 = arith.maximumf %268, %267 : vector<8x8x32xf32>
    %270 = vector.broadcast %cst_62 : f32 to vector<8x8x32xf32>
    %271 = arith.minimumf %270, %269 : vector<8x8x32xf32>
    %c0_63 = arith.constant 0 : index
    %c0_64 = arith.constant 0 : index
    %272 = vector.load %arg4[%c0_63, %c0_64] : memref<1x32xf32, #tpu.memory_space<vmem>>, vector<1x32xf32>
    %273 = vector.shape_cast %272 : vector<1x32xf32> to vector<1x1x32xf32>
    %274 = vector.broadcast %273 : vector<1x1x32xf32> to vector<8x8x32xf32>
    %275 = arith.mulf %271, %274 : vector<8x8x32xf32>
    %cst_65 = arith.constant dense<0.000000e+00> : vector<8x8xf32>
    %276 = vector.multi_reduction <add>, %275, %cst_65 [2] : vector<8x8x32xf32> to vector<8x8xf32>
    %277 = vector.shape_cast %276 : vector<8x8xf32> to vector<1x8x8xf32>
    %c0_66 = arith.constant 0 : index
    %c0_67 = arith.constant 0 : index
    %c0_68 = arith.constant 0 : index
    %278 = vector.load %arg5[%c0_66, %c0_67, %c0_68] : memref<1x8x8xf32, #tpu.memory_space<vmem>>, vector<1x8x8xf32>
    tpu.vector_store %arg5[%c0_66, %c0_67, %c0_68], %277 {strides = array<i32>} : memref<1x8x8xf32, #tpu.memory_space<vmem>>, vector<1x8x8xf32>,
    return
  }
  func.func @transform_0(%arg0: i32) -> (i32, i32, i32) {
    %c0_i32 = arith.constant 0 : i32
    %c0_i32_0 = arith.constant 0 : i32
    %c0_i32_1 = arith.constant 0 : i32
    return %c0_i32, %arg0, %c0_i32_0 : i32, i32, i32
  }
  func.func @transform_1(%arg0: i32) -> (i32, i32) {
    %c0_i32 = arith.constant 0 : i32
    %c0_i32_0 = arith.constant 0 : i32
    %c0_i32_1 = arith.constant 0 : i32
    return %c0_i32, %c0_i32_0 : i32, i32
  }
  func.func @transform_2(%arg0: i32) -> (i32, i32) {
    %c0_i32 = arith.constant 0 : i32
    %c0_i32_0 = arith.constant 0 : i32
    %c0_i32_1 = arith.constant 0 : i32
    return %c0_i32, %c0_i32_0 : i32, i32
  }
  func.func @transform_3(%arg0: i32) -> (i32, i32) {
    %c0_i32 = arith.constant 0 : i32
    %c0_i32_0 = arith.constant 0 : i32
    %c0_i32_1 = arith.constant 0 : i32
    return %c0_i32, %c0_i32_0 : i32, i32
  }
  func.func @transform_4(%arg0: i32) -> (i32, i32, i32) {
    %c0_i32 = arith.constant 0 : i32
    %c0_i32_0 = arith.constant 0 : i32
    %c0_i32_1 = arith.constant 0 : i32
    return %arg0, %c0_i32, %c0_i32_0 : i32, i32, i32
  }
}

</mosaic_0001>

<llo_original>
// kernel: tpu_custom_call.1
$region0: #{tpu_custom_call.1}
  #allocation0 [shape = 'u32[]', space=smem, size = 0x4, offset = 0x4, fixed_abs, tag = 'smem constant byte address 0x4 - core index']
  #allocation1 [shape = 'u32[144,128]{1,0:T(1,128)}', space=vmem, size = 0x12000, scoped, tag = 'internal scratch']
  #allocation2 [shape = 'f32[8,8,32]{2,1,0:T(8,128)}', space=vmem, size = 0x8000, scoped, tag = 'scratch operand']
  %s0 = inlined_call_operand.vmem [shape: f32[8,8,4], index: 0, kind: input, shape index: {}]
  %s1 = inlined_call_operand.vmem [shape: f32[4,128], index: 1, kind: input, shape index: {}]
  %s2 = inlined_call_operand.vmem [shape: f32[32,128], index: 2, kind: input, shape index: {}]
  %s3 = inlined_call_operand.vmem [shape: f32[1,32], index: 3, kind: input, shape index: {}]
  %s4 = inlined_call_operand.hbm [shape: f32[1,8,8], index: 4, kind: output, shape index: {}]
  %s5 = sld [smem:[#allocation0]]
  $region26: #{tpu_custom_call.1} parent=0
    _
  %s7 = ssub.s32 1, %s5
  %s8 = scalar_select 0, %s7, %s5
  $region1: #{tpu_custom_call.1} parent=0
    #allocation3 [shape = 'u8[4096]{0}', space=vmem, size = 0x1000, scoped, tag = 'output window, operand 0, single buffered']
    #allocation4 [shape = 's32[1]{0}', space=sflag, size = 0x4, scoped, tag = 'scoped memory for tpu_custom_call.1']
    %9 = vsyncpa [#allocation4], 0
    // Predicated region
    $region2: #{tpu_custom_call.1} parent=1 // pred_check
      _
    $region3: #{tpu_custom_call.1} parent=1 // pred_check_branch
      %11 = sbr.rel (0) target = $region5
    $region4: #{tpu_custom_call.1} parent=1 // pred_region
      _
    $region5: #{tpu_custom_call.1} parent=1 // pred_fallthru
      _
    // Predicated region
    $region6: #{tpu_custom_call.1} parent=1 // pred_check
      _
    $region7: #{tpu_custom_call.1} parent=1 // pred_check_branch
      %13 = sbr.rel (0) target = $region9
    $region8: #{tpu_custom_call.1} parent=1 // pred_region
      _
    $region9: #{tpu_custom_call.1} parent=1 // pred_fallthru
      _
    // Predicated region
    $region10: #{tpu_custom_call.1} parent=1 // pred_check
      _
    $region11: #{tpu_custom_call.1} parent=1 // pred_check_branch
      %15 = sbr.rel (0) target = $region13
    $region12: #{tpu_custom_call.1} parent=1 // pred_region
      _
    $region13: #{tpu_custom_call.1} parent=1 // pred_fallthru
      _
    // Predicated region
    $region14: #{tpu_custom_call.1} parent=1 // pred_check
      _
    $region15: #{tpu_custom_call.1} parent=1 // pred_check_branch
      %17 = sbr.rel (0) target = $region17
    $region16: #{tpu_custom_call.1} parent=1 // pred_region
      _
    $region17: #{tpu_custom_call.1} parent=1 // pred_fallthru
      _
    %v18 = vld [vmem:[%s0] sm:$0xff]
    %v19 = vld [vmem:[%s0 + $0x8] sm:$0xff]
    %v20 = vld [vmem:[%s0 + $0x10] sm:$0xff]
    %v21 = vld [vmem:[%s0 + $0x18] sm:$0xff]
    %v22 = vld [vmem:[%s0 + $0x20] sm:$0xff]
    %v23 = vld [vmem:[%s0 + $0x28] sm:$0xff]
    %v24 = vld [vmem:[%s0 + $0x30] sm:$0xff]
    %v25 = vld [vmem:[%s0 + $0x38] sm:$0xff]
    %vm26 = vcmp.ne.f32.partialorder %v18, %v18
    %vm27 = vcmp.ne.f32.partialorder %v19, %v19
    %vm28 = vcmp.ne.f32.partialorder %v20, %v20
    %vm29 = vcmp.ne.f32.partialorder %v21, %v21
    %vm30 = vcmp.ne.f32.partialorder %v22, %v22
    %vm31 = vcmp.ne.f32.partialorder %v23, %v23
    %vm32 = vcmp.ne.f32.partialorder %v24, %v24
    %vm33 = vcmp.ne.f32.partialorder %v25, %v25
    %v34 = vsel %vm26, 0.0, %v18
    %v35 = vsel %vm27, 0.0, %v19
    %v36 = vsel %vm28, 0.0, %v20
    %v37 = vsel %vm29, 0.0, %v21
    %v38 = vsel %vm30, 0.0, %v22
    %v39 = vsel %vm31, 0.0, %v23
    %v40 = vsel %vm32, 0.0, %v24
    %v41 = vsel %vm33, 0.0, %v25
    %v42 = vld [vmem:[%s1] sm:$0xf]
    %vm43 = vcmask 31744
    %v45 = vsel %vm43, %v34, 0
    %v48 = vsel %vm43, %v35, 0
    %v51 = vsel %vm43, %v36, 0
    %v54 = vsel %vm43, %v37, 0
    %v57 = vsel %vm43, %v38, 0
    %v60 = vsel %vm43, %v39, 0
    %v63 = vsel %vm43, %v40, 0
    %v66 = vsel %vm43, %v41, 0
    %vm68 = vcmask 1043456
    %v70 = vsel %vm68, %v42, 0
    %72 = vmatprep.subr.mxu0 0.0
    %73 = vmatpush1.msra.mxu0 0.0
    %74 = vmatprep.subr.mxu0 0.0
    %75 = vmatpush1.msra.mxu0 0.0
    %76 = vmatprep.subr.mxu0 0.0
    %77 = vmatpush1.msra.mxu0 0.0
    %78 = vmatprep.subr.mxu0 0.0
    %79 = vmatpush1.msra.mxu0 0.0
    %80 = vmatprep.subr.mxu0 0.0
    %81 = vmatpush1.msra.mxu0 0.0
    %82 = vmatprep.subr.mxu0 0.0
    %83 = vmatpush1.msra.mxu0 0.0
    %84 = vmatprep.subr.mxu0 0.0
    %85 = vmatpush1.msra.mxu0 0.0
    %86 = vmatprep.subr.mxu0 0.0
    %87 = vmatpush1.msra.mxu0 0.0
    %88 = vmatprep.subr.mxu0 0.0
    %89 = vmatpush1.msra.mxu0 0.0
    %90 = vmatprep.subr.mxu0 0.0
    %91 = vmatpush1.msra.mxu0 0.0
    %92 = vmatprep.subr.mxu0 0.0
    %93 = vmatpush1.msra.mxu0 0.0
    %94 = vmatprep.subr.mxu0 0.0
    %95 = vmatpush1.msra.mxu0 0.0
    %96 = vmatprep.subr.mxu0 0.0
    %97 = vmatpush1.msra.mxu0 0.0
    %98 = vmatprep.subr.mxu0 0.0
    %99 = vmatpush1.msra.mxu0 0.0
    %100 = vmatprep.subr.mxu0 0.0
    %101 = vmatpush1.msra.mxu0 0.0
    %102 = vmatprep.subr.mxu0 0.0
    %103 = vmatpush1.msra.mxu0 %v70
    %104 = vmatprep.subr.mxu0 0.0
    %105 = vmatpush2.msra.mxu0 0.0
    %106 = vmatprep.subr.mxu0 0.0
    %107 = vmatpush2.msra.mxu0 0.0
    %108 = vmatprep.subr.mxu0 0.0
    %109 = vmatpush2.msra.mxu0 0.0
    %110 = vmatprep.subr.mxu0 0.0
    %111 = vmatpush2.msra.mxu0 0.0
    %112 = vmatprep.subr.mxu0 0.0
    %113 = vmatpush2.msra.mxu0 0.0
    %114 = vmatprep.subr.mxu0 0.0
    %115 = vmatpush2.msra.mxu0 0.0
    %116 = vmatprep.subr.mxu0 0.0
    %117 = vmatpush2.msra.mxu0 0.0
    %118 = vmatprep.subr.mxu0 0.0
    %119 = vmatpush2.msra.mxu0 0.0
    %120 = vmatprep.subr.mxu0 0.0
    %121 = vmatpush2.msra.mxu0 0.0
    %122 = vmatprep.subr.mxu0 0.0
    %123 = vmatpush2.msra.mxu0 0.0
    %124 = vmatprep.subr.mxu0 0.0
    %125 = vmatpush2.msra.mxu0 0.0
    %126 = vmatprep.subr.mxu0 0.0
    %127 = vmatpush2.msra.mxu0 0.0
    %128 = vmatprep.subr.mxu0 0.0
    %129 = vmatpush2.msra.mxu0 0.0
    %130 = vmatprep.subr.mxu0 0.0
    %131 = vmatpush2.msra.mxu0 0.0
    %132 = vmatprep.subr.mxu0 0.0
    %133 = vmatpush2.msra.mxu0 0.0
    %134 = vmatprep.subr.mxu0 0.0
    %135 = vmatpush2.msra.mxu0 0.0
    %136 = vmatprep.mubr.f32.mxu0 0.0
    %137 = vmatmul.mubr.f32.gmra.mxu0 %v45
    %v138 = vpop.f32.mrf.mxu0
    %v139 = vadd.f32 0.0, %v138
    %v140 = vpop.f32.mrf.mxu0
    %141 = vmatprep.mubr.f32.mxu0 0.0
    %142 = vmatmul.mubr.f32.gmra.mxu0 %v48
    %v143 = vpop.f32.mrf.mxu0
    %v144 = vadd.f32 0.0, %v143
    %v145 = vpop.f32.mrf.mxu0
    %146 = vmatprep.mubr.f32.mxu0 0.0
    %147 = vmatmul.mubr.f32.gmra.mxu0 %v51
    %v148 = vpop.f32.mrf.mxu0
    %v149 = vadd.f32 0.0, %v148
    %v150 = vpop.f32.mrf.mxu0
    %151 = vmatprep.mubr.f32.mxu0 0.0
    %152 = vmatmul.mubr.f32.gmra.mxu0 %v54
    %v153 = vpop.f32.mrf.mxu0
    %v154 = vadd.f32 0.0, %v153
    %v155 = vpop.f32.mrf.mxu0
    %156 = vmatprep.mubr.f32.mxu0 0.0
    %157 = vmatmul.mubr.f32.gmra.mxu0 %v57
    %v158 = vpop.f32.mrf.mxu0
    %v159 = vadd.f32 0.0, %v158
    %v160 = vpop.f32.mrf.mxu0
    %161 = vmatprep.mubr.f32.mxu0 0.0
    %162 = vmatmul.mubr.f32.gmra.mxu0 %v60
    %v163 = vpop.f32.mrf.mxu0
    %v164 = vadd.f32 0.0, %v163
    %v165 = vpop.f32.mrf.mxu0
    %166 = vmatprep.mubr.f32.mxu0 0.0
    %167 = vmatmul.mubr.f32.gmra.mxu0 %v63
    %v168 = vpop.f32.mrf.mxu0
    %v169 = vadd.f32 0.0, %v168
    %v170 = vpop.f32.mrf.mxu0
    %171 = vmatprep.mubr.f32.mxu0 0.0
    %172 = vmatmul.mubr.f32.gmra.mxu0 %v66
    %v173 = vpop.f32.mrf.mxu0
    %v174 = vadd.f32 0.0, %v173
    %v175 = vpop.f32.mrf.mxu0
    %176 = vdwg.mxu0
    %v177 = vld [vmem:[%s2] sm:$0xff]
    %v178 = vld [vmem:[%s2 + $0x8] sm:$0xff]
    %v179 = vld [vmem:[%s2 + $0x10] sm:$0xff]
    %v180 = vld [vmem:[%s2 + $0x18] sm:$0xff]
    %vm181 = vcmask 261120
    %v183 = vsel %vm181, 0.0, 0
    %185 = vmatprep.subr.mxu0 0.0
    %186 = vmatpush1.msra.mxu0 0.0
    %187 = vmatprep.subr.mxu0 0.0
    %188 = vmatpush1.msra.mxu0 0.0
    %189 = vmatprep.subr.mxu0 0.0
    %190 = vmatpush1.msra.mxu0 0.0
    %191 = vmatprep.subr.mxu0 0.0
    %192 = vmatpush1.msra.mxu0 0.0
    %193 = vmatprep.subr.mxu0 0.0
    %194 = vmatpush1.msra.mxu0 0.0
    %195 = vmatprep.subr.mxu0 0.0
    %196 = vmatpush1.msra.mxu0 0.0
    %197 = vmatprep.subr.mxu0 0.0
    %198 = vmatpush1.msra.mxu0 0.0
    %199 = vmatprep.subr.mxu0 0.0
    %200 = vmatpush1.msra.mxu0 0.0
    %201 = vmatprep.subr.mxu0 0.0
    %202 = vmatpush1.msra.mxu0 0.0
    %203 = vmatprep.subr.mxu0 0.0
    %204 = vmatpush1.msra.mxu0 0.0
    %205 = vmatprep.subr.mxu0 0.0
    %206 = vmatpush1.msra.mxu0 0.0
    %207 = vmatprep.subr.mxu0 0.0
    %208 = vmatpush1.msra.mxu0 0.0
    %209 = vmatprep.subr.mxu0 0.0
    %210 = vmatpush1.msra.mxu0 %v180
    %211 = vmatprep.subr.mxu0 0.0
    %212 = vmatpush1.msra.mxu0 %v179
    %213 = vmatprep.subr.mxu0 0.0
    %214 = vmatpush1.msra.mxu0 %v178
    %215 = vmatprep.subr.mxu0 0.0
    %216 = vmatpush1.msra.mxu0 %v177
    %217 = vmatprep.subr.mxu0 0.0
    %218 = vmatpush2.msra.mxu0 0.0
    %219 = vmatprep.subr.mxu0 0.0
    %220 = vmatpush2.msra.mxu0 0.0
    %221 = vmatprep.subr.mxu0 0.0
    %222 = vmatpush2.msra.mxu0 0.0
    %223 = vmatprep.subr.mxu0 0.0
    %224 = vmatpush2.msra.mxu0 0.0
    %225 = vmatprep.subr.mxu0 0.0
    %226 = vmatpush2.msra.mxu0 0.0
    %227 = vmatprep.subr.mxu0 0.0
    %228 = vmatpush2.msra.mxu0 0.0
    %229 = vmatprep.subr.mxu0 0.0
    %230 = vmatpush2.msra.mxu0 0.0
    %231 = vmatprep.subr.mxu0 0.0
    %232 = vmatpush2.msra.mxu0 0.0
    %233 = vmatprep.subr.mxu0 0.0
    %234 = vmatpush2.msra.mxu0 0.0
    %235 = vmatprep.subr.mxu0 0.0
    %236 = vmatpush2.msra.mxu0 0.0
    %237 = vmatprep.subr.mxu0 0.0
    %238 = vmatpush2.msra.mxu0 0.0
    %239 = vmatprep.subr.mxu0 0.0
    %240 = vmatpush2.msra.mxu0 0.0
    %241 = vmatprep.subr.mxu0 0.0
    %242 = vmatpush2.msra.mxu0 0.0
    %243 = vmatprep.subr.mxu0 0.0
    %244 = vmatpush2.msra.mxu0 0.0
    %245 = vmatprep.subr.mxu0 0.0
    %246 = vmatpush2.msra.mxu0 0.0
    %247 = vmatprep.subr.mxu0 0.0
    %248 = vmatpush2.msra.mxu0 0.0
    %249 = vmatprep.mubr.f32.mxu0 0.0
    %250 = vmatmul.mubr.f32.gmra.mxu0 %v183
    %v251 = vpop.f32.mrf.mxu0
    %v252 = vadd.f32 0.0, %v251
    %v253 = vpop.f32.mrf.mxu0
    %254 = vdwg.mxu0
    %v255 = vadd.f32 %v139, %v252
    %v256 = vxor.u32 %v255, 2147483648
    %v257 = vmul.f32 %v256, 1.442695
    %v258 = vpow.pop %v257
    %v259 = vadd.f32 %v258, 1.0
    %v260 = vrcp.pop %v259
    %v261 = vmul.f32 1.0, %v260
    %v262 = vtanh.pop %v255
    %v263 = vmul.f32 %v261, 0.0
    %265 = vrot.lane.b32.xlu0 %v262, 64
    %v266 = vpop.permute.xlu0 %265
    %v268 = vmul.f32 %v261, %v266
    %270 = vrot.lane.b32.xlu0 %v268, 32
    %v271 = vpop.permute.xlu0 %270
    %v273 = vadd.f32 %v263, %v271
    %v274 = vtanh.pop %v273
    %276 = vrot.lane.b32.xlu0 %v274, 64
    %v277 = vpop.permute.xlu0 %276
    %v279 = vmul.f32 %v261, %v277
    %281 = vrot.lane.b32.xlu0 %v279, 32
    %v282 = vpop.permute.xlu0 %281
    %284 = vst.msk [vmem:[#allocation2] sm:$0xff] %vm181, %v282
    %v285 = vsel %vm181, %v282, 0
    %287 = vmatprep.subr.mxu0 0.0
    %288 = vmatpush1.msra.mxu0 0.0
    %289 = vmatprep.subr.mxu0 0.0
    %290 = vmatpush1.msra.mxu0 0.0
    %291 = vmatprep.subr.mxu0 0.0
    %292 = vmatpush1.msra.mxu0 0.0
    %293 = vmatprep.subr.mxu0 0.0
    %294 = vmatpush1.msra.mxu0 0.0
    %295 = vmatprep.subr.mxu0 0.0
    %296 = vmatpush1.msra.mxu0 0.0
    %297 = vmatprep.subr.mxu0 0.0
    %298 = vmatpush1.msra.mxu0 0.0
    %299 = vmatprep.subr.mxu0 0.0
    %300 = vmatpush1.msra.mxu0 0.0
    %301 = vmatprep.subr.mxu0 0.0
    %302 = vmatpush1.msra.mxu0 0.0
    %303 = vmatprep.subr.mxu0 0.0
    %304 = vmatpush1.msra.mxu0 0.0
    %305 = vmatprep.subr.mxu0 0.0
    %306 = vmatpush1.msra.mxu0 0.0
    %307 = vmatprep.subr.mxu0 0.0
    %308 = vmatpush1.msra.mxu0 0.0
    %309 = vmatprep.subr.mxu0 0.0
    %310 = vmatpush1.msra.mxu0 0.0
    %311 = vmatprep.subr.mxu0 0.0
    %312 = vmatpush1.msra.mxu0 %v180
    %313 = vmatprep.subr.mxu0 0.0
    %314 = vmatpush1.msra.mxu0 %v179
    %315 = vmatprep.subr.mxu0 0.0
    %316 = vmatpush1.msra.mxu0 %v178
    %317 = vmatprep.subr.mxu0 0.0
    %318 = vmatpush1.msra.mxu0 %v177
    %319 = vmatprep.subr.mxu0 0.0
    %320 = vmatpush2.msra.mxu0 0.0
    %321 = vmatprep.subr.mxu0 0.0
    %322 = vmatpush2.msra.mxu0 0.0
    %323 = vmatprep.subr.mxu0 0.0
    %324 = vmatpush2.msra.mxu0 0.0
    %325 = vmatprep.subr.mxu0 0.0
    %326 = vmatpush2.msra.mxu0 0.0
    %327 = vmatprep.subr.mxu0 0.0
    %328 = vmatpush2.msra.mxu0 0.0
    %329 = vmatprep.subr.mxu0 0.0
    %330 = vmatpush2.msra.mxu0 0.0
    %331 = vmatprep.subr.mxu0 0.0
    %332 = vmatpush2.msra.mxu0 0.0
    %333 = vmatprep.subr.mxu0 0.0
    %334 = vmatpush2.msra.mxu0 0.0
    %335 = vmatprep.subr.mxu0 0.0
    %336 = vmatpush2.msra.mxu0 0.0
    %337 = vmatprep.subr.mxu0 0.0
    %338 = vmatpush2.msra.mxu0 0.0
    %339 = vmatprep.subr.mxu0 0.0
    %340 = vmatpush2.msra.mxu0 0.0
    %341 = vmatprep.subr.mxu0 0.0
    %342 = vmatpush2.msra.mxu0 0.0
    %343 = vmatprep.subr.mxu0 0.0
    %344 = vmatpush2.msra.mxu0 0.0
    %345 = vmatprep.subr.mxu0 0.0
    %346 = vmatpush2.msra.mxu0 0.0
    %347 = vmatprep.subr.mxu0 0.0
    %348 = vmatpush2.msra.mxu0 0.0
    %349 = vmatprep.subr.mxu0 0.0
    %350 = vmatpush2.msra.mxu0 0.0
    %351 = vmatprep.mubr.f32.mxu0 0.0
    %352 = vmatmul.mubr.f32.gmra.mxu0 %v285
    %v353 = vpop.f32.mrf.mxu0
    %v354 = vadd.f32 0.0, %v353
    %v355 = vpop.f32.mrf.mxu0
    %356 = vdwg.mxu0
    %v357 = vadd.f32 %v144, %v354
    %v358 = vxor.u32 %v357, 2147483648
    %v359 = vmul.f32 %v358, 1.442695
    %v360 = vpow.pop %v359
    %v361 = vadd.f32 %v360, 1.0
    %v362 = vrcp.pop %v361
    %v363 = vmul.f32 1.0, %v362
    %v364 = vtanh.pop %v357
    %v365 = vmul.f32 %v363, %v273
    %367 = vrot.lane.b32.xlu0 %v364, 64
    %v368 = vpop.permute.xlu0 %367
    %v370 = vmul.f32 %v363, %v368
    %372 = vrot.lane.b32.xlu0 %v370, 32
    %v373 = vpop.permute.xlu0 %372
    %v375 = vadd.f32 %v365, %v373
    %v376 = vtanh.pop %v375
    %378 = vrot.lane.b32.xlu0 %v376, 64
    %v379 = vpop.permute.xlu0 %378
    %v381 = vmul.f32 %v363, %v379
    %383 = vrot.lane.b32.xlu0 %v381, 32
    %v384 = vpop.permute.xlu0 %383
    %s386 = scalar_lea.vmem [#allocation2], 8
    %387 = vst.msk [vmem:[%s386] sm:$0xff] %vm181, %v384
    %v388 = vsel %vm181, %v384, 0
    %390 = vmatprep.subr.mxu0 0.0
    %391 = vmatpush1.msra.mxu0 0.0
    %392 = vmatprep.subr.mxu0 0.0
    %393 = vmatpush1.msra.mxu0 0.0
    %394 = vmatprep.subr.mxu0 0.0
    %395 = vmatpush1.msra.mxu0 0.0
    %396 = vmatprep.subr.mxu0 0.0
    %397 = vmatpush1.msra.mxu0 0.0
    %398 = vmatprep.subr.mxu0 0.0
    %399 = vmatpush1.msra.mxu0 0.0
    %400 = vmatprep.subr.mxu0 0.0
    %401 = vmatpush1.msra.mxu0 0.0
    %402 = vmatprep.subr.mxu0 0.0
    %403 = vmatpush1.msra.mxu0 0.0
    %404 = vmatprep.subr.mxu0 0.0
    %405 = vmatpush1.msra.mxu0 0.0
    %406 = vmatprep.subr.mxu0 0.0
    %407 = vmatpush1.msra.mxu0 0.0
    %408 = vmatprep.subr.mxu0 0.0
    %409 = vmatpush1.msra.mxu0 0.0
    %410 = vmatprep.subr.mxu0 0.0
    %411 = vmatpush1.msra.mxu0 0.0
    %412 = vmatprep.subr.mxu0 0.0
    %413 = vmatpush1.msra.mxu0 0.0
    %414 = vmatprep.subr.mxu0 0.0
    %415 = vmatpush1.msra.mxu0 %v180
    %416 = vmatprep.subr.mxu0 0.0
    %417 = vmatpush1.msra.mxu0 %v179
    %418 = vmatprep.subr.mxu0 0.0
    %419 = vmatpush1.msra.mxu0 %v178
    %420 = vmatprep.subr.mxu0 0.0
    %421 = vmatpush1.msra.mxu0 %v177
    %422 = vmatprep.subr.mxu0 0.0
    %423 = vmatpush2.msra.mxu0 0.0
    %424 = vmatprep.subr.mxu0 0.0
    %425 = vmatpush2.msra.mxu0 0.0
    %426 = vmatprep.subr.mxu0 0.0
    %427 = vmatpush2.msra.mxu0 0.0
    %428 = vmatprep.subr.mxu0 0.0
    %429 = vmatpush2.msra.mxu0 0.0
    %430 = vmatprep.subr.mxu0 0.0
    %431 = vmatpush2.msra.mxu0 0.0
    %432 = vmatprep.subr.mxu0 0.0
    %433 = vmatpush2.msra.mxu0 0.0
    %434 = vmatprep.subr.mxu0 0.0
    %435 = vmatpush2.msra.mxu0 0.0
    %436 = vmatprep.subr.mxu0 0.0
    %437 = vmatpush2.msra.mxu0 0.0
    %438 = vmatprep.subr.mxu0 0.0
    %439 = vmatpush2.msra.mxu0 0.0
    %440 = vmatprep.subr.mxu0 0.0
    %441 = vmatpush2.msra.mxu0 0.0
    %442 = vmatprep.subr.mxu0 0.0
    %443 = vmatpush2.msra.mxu0 0.0
    %444 = vmatprep.subr.mxu0 0.0
    %445 = vmatpush2.msra.mxu0 0.0
    %446 = vmatprep.subr.mxu0 0.0
    %447 = vmatpush2.msra.mxu0 0.0
    %448 = vmatprep.subr.mxu0 0.0
    %449 = vmatpush2.msra.mxu0 0.0
    %450 = vmatprep.subr.mxu0 0.0
    %451 = vmatpush2.msra.mxu0 0.0
    %452 = vmatprep.subr.mxu0 0.0
    %453 = vmatpush2.msra.mxu0 0.0
    %454 = vmatprep.mubr.f32.mxu0 0.0
    %455 = vmatmul.mubr.f32.gmra.mxu0 %v388
    %v456 = vpop.f32.mrf.mxu0
    %v457 = vadd.f32 0.0, %v456
    %v458 = vpop.f32.mrf.mxu0
    %459 = vdwg.mxu0
    %v460 = vadd.f32 %v149, %v457
    %v461 = vxor.u32 %v460, 2147483648
    %v462 = vmul.f32 %v461, 1.442695
    %v463 = vpow.pop %v462
    %v464 = vadd.f32 %v463, 1.0
    %v465 = vrcp.pop %v464
    %v466 = vmul.f32 1.0, %v465
    %v467 = vtanh.pop %v460
    %v468 = vmul.f32 %v466, %v375
    %470 = vrot.lane.b32.xlu0 %v467, 64
    %v471 = vpop.permute.xlu0 %470
    %v473 = vmul.f32 %v466, %v471
    %475 = vrot.lane.b32.xlu0 %v473, 32
    %v476 = vpop.permute.xlu0 %475
    %v478 = vadd.f32 %v468, %v476
    %v479 = vtanh.pop %v478
    %481 = vrot.lane.b32.xlu0 %v479, 64
    %v482 = vpop.permute.xlu0 %481
    %v484 = vmul.f32 %v466, %v482
    %486 = vrot.lane.b32.xlu0 %v484, 32
    %v487 = vpop.permute.xlu0 %486
    %s489 = scalar_lea.vmem [#allocation2], 16
    %490 = vst.msk [vmem:[%s489] sm:$0xff] %vm181, %v487
    %v491 = vsel %vm181, %v487, 0
    %493 = vmatprep.subr.mxu0 0.0
    %494 = vmatpush1.msra.mxu0 0.0
    %495 = vmatprep.subr.mxu0 0.0
    %496 = vmatpush1.msra.mxu0 0.0
    %497 = vmatprep.subr.mxu0 0.0
    %498 = vmatpush1.msra.mxu0 0.0
    %499 = vmatprep.subr.mxu0 0.0
    %500 = vmatpush1.msra.mxu0 0.0
    %501 = vmatprep.subr.mxu0 0.0
    %502 = vmatpush1.msra.mxu0 0.0
    %503 = vmatprep.subr.mxu0 0.0
    %504 = vmatpush1.msra.mxu0 0.0
    %505 = vmatprep.subr.mxu0 0.0
    %506 = vmatpush1.msra.mxu0 0.0
    %507 = vmatprep.subr.mxu0 0.0
    %508 = vmatpush1.msra.mxu0 0.0
    %509 = vmatprep.subr.mxu0 0.0
    %510 = vmatpush1.msra.mxu0 0.0
    %511 = vmatprep.subr.mxu0 0.0
    %512 = vmatpush1.msra.mxu0 0.0
    %513 = vmatprep.subr.mxu0 0.0
    %514 = vmatpush1.msra.mxu0 0.0
    %515 = vmatprep.subr.mxu0 0.0
    %516 = vmatpush1.msra.mxu0 0.0
    %517 = vmatprep.subr.mxu0 0.0
    %518 = vmatpush1.msra.mxu0 %v180
    %519 = vmatprep.subr.mxu0 0.0
    %520 = vmatpush1.msra.mxu0 %v179
    %521 = vmatprep.subr.mxu0 0.0
    %522 = vmatpush1.msra.mxu0 %v178
    %523 = vmatprep.subr.mxu0 0.0
    %524 = vmatpush1.msra.mxu0 %v177
    %525 = vmatprep.subr.mxu0 0.0
    %526 = vmatpush2.msra.mxu0 0.0
    %527 = vmatprep.subr.mxu0 0.0
    %528 = vmatpush2.msra.mxu0 0.0
    %529 = vmatprep.subr.mxu0 0.0
    %530 = vmatpush2.msra.mxu0 0.0
    %531 = vmatprep.subr.mxu0 0.0
    %532 = vmatpush2.msra.mxu0 0.0
    %533 = vmatprep.subr.mxu0 0.0
    %534 = vmatpush2.msra.mxu0 0.0
    %535 = vmatprep.subr.mxu0 0.0
    %536 = vmatpush2.msra.mxu0 0.0
    %537 = vmatprep.subr.mxu0 0.0
    %538 = vmatpush2.msra.mxu0 0.0
    %539 = vmatprep.subr.mxu0 0.0
    %540 = vmatpush2.msra.mxu0 0.0
    %541 = vmatprep.subr.mxu0 0.0
    %542 = vmatpush2.msra.mxu0 0.0
    %543 = vmatprep.subr.mxu0 0.0
    %544 = vmatpush2.msra.mxu0 0.0
    %545 = vmatprep.subr.mxu0 0.0
    %546 = vmatpush2.msra.mxu0 0.0
    %547 = vmatprep.subr.mxu0 0.0
    %548 = vmatpush2.msra.mxu0 0.0
    %549 = vmatprep.subr.mxu0 0.0
    %550 = vmatpush2.msra.mxu0 0.0
    %551 = vmatprep.subr.mxu0 0.0
    %552 = vmatpush2.msra.mxu0 0.0
    %553 = vmatprep.subr.mxu0 0.0
    %554 = vmatpush2.msra.mxu0 0.0
    %555 = vmatprep.subr.mxu0 0.0
    %556 = vmatpush2.msra.mxu0 0.0
    %557 = vmatprep.mubr.f32.mxu0 0.0
    %558 = vmatmul.mubr.f32.gmra.mxu0 %v491
    %v559 = vpop.f32.mrf.mxu0
    %v560 = vadd.f32 0.0, %v559
    %v561 = vpop.f32.mrf.mxu0
    %562 = vdwg.mxu0
    %v563 = vadd.f32 %v154, %v560
    %v564 = vxor.u32 %v563, 2147483648
    %v565 = vmul.f32 %v564, 1.442695
    %v566 = vpow.pop %v565
    %v567 = vadd.f32 %v566, 1.0
    %v568 = vrcp.pop %v567
    %v569 = vmul.f32 1.0, %v568
    %v570 = vtanh.pop %v563
    %v571 = vmul.f32 %v569, %v478
    %573 = vrot.lane.b32.xlu0 %v570, 64
    %v574 = vpop.permute.xlu0 %573
    %v576 = vmul.f32 %v569, %v574
    %578 = vrot.lane.b32.xlu0 %v576, 32
    %v579 = vpop.permute.xlu0 %578
    %v581 = vadd.f32 %v571, %v579
    %v582 = vtanh.pop %v581
    %584 = vrot.lane.b32.xlu0 %v582, 64
    %v585 = vpop.permute.xlu0 %584
    %v587 = vmul.f32 %v569, %v585
    %589 = vrot.lane.b32.xlu0 %v587, 32
    %v590 = vpop.permute.xlu0 %589
    %s592 = scalar_lea.vmem [#allocation2], 24
    %593 = vst.msk [vmem:[%s592] sm:$0xff] %vm181, %v590
    %v594 = vsel %vm181, %v590, 0
    %596 = vmatprep.subr.mxu0 0.0
    %597 = vmatpush1.msra.mxu0 0.0
    %598 = vmatprep.subr.mxu0 0.0
    %599 = vmatpush1.msra.mxu0 0.0
    %600 = vmatprep.subr.mxu0 0.0
    %601 = vmatpush1.msra.mxu0 0.0
    %602 = vmatprep.subr.mxu0 0.0
    %603 = vmatpush1.msra.mxu0 0.0
    %604 = vmatprep.subr.mxu0 0.0
    %605 = vmatpush1.msra.mxu0 0.0
    %606 = vmatprep.subr.mxu0 0.0
    %607 = vmatpush1.msra.mxu0 0.0
    %608 = vmatprep.subr.mxu0 0.0
    %609 = vmatpush1.msra.mxu0 0.0
    %610 = vmatprep.subr.mxu0 0.0
    %611 = vmatpush1.msra.mxu0 0.0
    %612 = vmatprep.subr.mxu0 0.0
    %613 = vmatpush1.msra.mxu0 0.0
    %614 = vmatprep.subr.mxu0 0.0
    %615 = vmatpush1.msra.mxu0 0.0
    %616 = vmatprep.subr.mxu0 0.0
    %617 = vmatpush1.msra.mxu0 0.0
    %618 = vmatprep.subr.mxu0 0.0
    %619 = vmatpush1.msra.mxu0 0.0
    %620 = vmatprep.subr.mxu0 0.0
    %621 = vmatpush1.msra.mxu0 %v180
    %622 = vmatprep.subr.mxu0 0.0
    %623 = vmatpush1.msra.mxu0 %v179
    %624 = vmatprep.subr.mxu0 0.0
    %625 = vmatpush1.msra.mxu0 %v178
    %626 = vmatprep.subr.mxu0 0.0
    %627 = vmatpush1.msra.mxu0 %v177
    %628 = vmatprep.subr.mxu0 0.0
    %629 = vmatpush2.msra.mxu0 0.0
    %630 = vmatprep.subr.mxu0 0.0
    %631 = vmatpush2.msra.mxu0 0.0
    %632 = vmatprep.subr.mxu0 0.0
    %633 = vmatpush2.msra.mxu0 0.0
    %634 = vmatprep.subr.mxu0 0.0
    %635 = vmatpush2.msra.mxu0 0.0
    %636 = vmatprep.subr.mxu0 0.0
    %637 = vmatpush2.msra.mxu0 0.0
    %638 = vmatprep.subr.mxu0 0.0
    %639 = vmatpush2.msra.mxu0 0.0
    %640 = vmatprep.subr.mxu0 0.0
    %641 = vmatpush2.msra.mxu0 0.0
    %642 = vmatprep.subr.mxu0 0.0
    %643 = vmatpush2.msra.mxu0 0.0
    %644 = vmatprep.subr.mxu0 0.0
    %645 = vmatpush2.msra.mxu0 0.0
    %646 = vmatprep.subr.mxu0 0.0
    %647 = vmatpush2.msra.mxu0 0.0
    %648 = vmatprep.subr.mxu0 0.0
    %649 = vmatpush2.msra.mxu0 0.0
    %650 = vmatprep.subr.mxu0 0.0
    %651 = vmatpush2.msra.mxu0 0.0
    %652 = vmatprep.subr.mxu0 0.0
    %653 = vmatpush2.msra.mxu0 0.0
    %654 = vmatprep.subr.mxu0 0.0
    %655 = vmatpush2.msra.mxu0 0.0
    %656 = vmatprep.subr.mxu0 0.0
    %657 = vmatpush2.msra.mxu0 0.0
    %658 = vmatprep.subr.mxu0 0.0
    %659 = vmatpush2.msra.mxu0 0.0
    %660 = vmatprep.mubr.f32.mxu0 0.0
    %661 = vmatmul.mubr.f32.gmra.mxu0 %v594
    %v662 = vpop.f32.mrf.mxu0
    %v663 = vadd.f32 0.0, %v662
    %v664 = vpop.f32.mrf.mxu0
    %665 = vdwg.mxu0
    %v666 = vadd.f32 %v159, %v663
    %v667 = vxor.u32 %v666, 2147483648
    %v668 = vmul.f32 %v667, 1.442695
    %v669 = vpow.pop %v668
    %v670 = vadd.f32 %v669, 1.0
    %v671 = vrcp.pop %v670
    %v672 = vmul.f32 1.0, %v671
    %v673 = vtanh.pop %v666
    %v674 = vmul.f32 %v672, %v581
    %676 = vrot.lane.b32.xlu0 %v673, 64
    %v677 = vpop.permute.xlu0 %676
    %v679 = vmul.f32 %v672, %v677
    %681 = vrot.lane.b32.xlu0 %v679, 32
    %v682 = vpop.permute.xlu0 %681
    %v684 = vadd.f32 %v674, %v682
    %v685 = vtanh.pop %v684
    %687 = vrot.lane.b32.xlu0 %v685, 64
    %v688 = vpop.permute.xlu0 %687
    %v690 = vmul.f32 %v672, %v688
    %692 = vrot.lane.b32.xlu0 %v690, 32
    %v693 = vpop.permute.xlu0 %692
    %s695 = scalar_lea.vmem [#allocation2], 32
    %696 = vst.msk [vmem:[%s695] sm:$0xff] %vm181, %v693
    %v697 = vsel %vm181, %v693, 0
    %699 = vmatprep.subr.mxu0 0.0
    %700 = vmatpush1.msra.mxu0 0.0
    %701 = vmatprep.subr.mxu0 0.0
    %702 = vmatpush1.msra.mxu0 0.0
    %703 = vmatprep.subr.mxu0 0.0
    %704 = vmatpush1.msra.mxu0 0.0
    %705 = vmatprep.subr.mxu0 0.0
    %706 = vmatpush1.msra.mxu0 0.0
    %707 = vmatprep.subr.mxu0 0.0
    %708 = vmatpush1.msra.mxu0 0.0
    %709 = vmatprep.subr.mxu0 0.0
    %710 = vmatpush1.msra.mxu0 0.0
    %711 = vmatprep.subr.mxu0 0.0
    %712 = vmatpush1.msra.mxu0 0.0
    %713 = vmatprep.subr.mxu0 0.0
    %714 = vmatpush1.msra.mxu0 0.0
    %715 = vmatprep.subr.mxu0 0.0
    %716 = vmatpush1.msra.mxu0 0.0
    %717 = vmatprep.subr.mxu0 0.0
    %718 = vmatpush1.msra.mxu0 0.0
    %719 = vmatprep.subr.mxu0 0.0
    %720 = vmatpush1.msra.mxu0 0.0
    %721 = vmatprep.subr.mxu0 0.0
    %722 = vmatpush1.msra.mxu0 0.0
    %723 = vmatprep.subr.mxu0 0.0
    %724 = vmatpush1.msra.mxu0 %v180
    %725 = vmatprep.subr.mxu0 0.0
    %726 = vmatpush1.msra.mxu0 %v179
    %727 = vmatprep.subr.mxu0 0.0
    %728 = vmatpush1.msra.mxu0 %v178
    %729 = vmatprep.subr.mxu0 0.0
    %730 = vmatpush1.msra.mxu0 %v177
    %731 = vmatprep.subr.mxu0 0.0
    %732 = vmatpush2.msra.mxu0 0.0
    %733 = vmatprep.subr.mxu0 0.0
    %734 = vmatpush2.msra.mxu0 0.0
    %735 = vmatprep.subr.mxu0 0.0
    %736 = vmatpush2.msra.mxu0 0.0
    %737 = vmatprep.subr.mxu0 0.0
    %738 = vmatpush2.msra.mxu0 0.0
    %739 = vmatprep.subr.mxu0 0.0
    %740 = vmatpush2.msra.mxu0 0.0
    %741 = vmatprep.subr.mxu0 0.0
    %742 = vmatpush2.msra.mxu0 0.0
    %743 = vmatprep.subr.mxu0 0.0
    %744 = vmatpush2.msra.mxu0 0.0
    %745 = vmatprep.subr.mxu0 0.0
    %746 = vmatpush2.msra.mxu0 0.0
    %747 = vmatprep.subr.mxu0 0.0
    %748 = vmatpush2.msra.mxu0 0.0
    %749 = vmatprep.subr.mxu0 0.0
    %750 = vmatpush2.msra.mxu0 0.0
    %751 = vmatprep.subr.mxu0 0.0
    %752 = vmatpush2.msra.mxu0 0.0
    %753 = vmatprep.subr.mxu0 0.0
    %754 = vmatpush2.msra.mxu0 0.0
    %755 = vmatprep.subr.mxu0 0.0
    %756 = vmatpush2.msra.mxu0 0.0
    %757 = vmatprep.subr.mxu0 0.0
    %758 = vmatpush2.msra.mxu0 0.0
    %759 = vmatprep.subr.mxu0 0.0
    %760 = vmatpush2.msra.mxu0 0.0
    %761 = vmatprep.subr.mxu0 0.0
    %762 = vmatpush2.msra.mxu0 0.0
    %763 = vmatprep.mubr.f32.mxu0 0.0
    %764 = vmatmul.mubr.f32.gmra.mxu0 %v697
    %v765 = vpop.f32.mrf.mxu0
    %v766 = vadd.f32 0.0, %v765
    %v767 = vpop.f32.mrf.mxu0
    %768 = vdwg.mxu0
    %v769 = vadd.f32 %v164, %v766
    %v770 = vxor.u32 %v769, 2147483648
    %v771 = vmul.f32 %v770, 1.442695
    %v772 = vpow.pop %v771
    %v773 = vadd.f32 %v772, 1.0
    %v774 = vrcp.pop %v773
    %v775 = vmul.f32 1.0, %v774
    %v776 = vtanh.pop %v769
    %v777 = vmul.f32 %v775, %v684
    %779 = vrot.lane.b32.xlu0 %v776, 64
    %v780 = vpop.permute.xlu0 %779
    %v782 = vmul.f32 %v775, %v780
    %784 = vrot.lane.b32.xlu0 %v782, 32
    %v785 = vpop.permute.xlu0 %784
    %v787 = vadd.f32 %v777, %v785
    %v788 = vtanh.pop %v787
    %790 = vrot.lane.b32.xlu0 %v788, 64
    %v791 = vpop.permute.xlu0 %790
    %v793 = vmul.f32 %v775, %v791
    %795 = vrot.lane.b32.xlu0 %v793, 32
    %v796 = vpop.permute.xlu0 %795
    %s798 = scalar_lea.vmem [#allocation2], 40
    %799 = vst.msk [vmem:[%s798] sm:$0xff] %vm181, %v796
    %v800 = vsel %vm181, %v796, 0
    %802 = vmatprep.subr.mxu0 0.0
    %803 = vmatpush1.msra.mxu0 0.0
    %804 = vmatprep.subr.mxu0 0.0
    %805 = vmatpush1.msra.mxu0 0.0
    %806 = vmatprep.subr.mxu0 0.0
    %807 = vmatpush1.msra.mxu0 0.0
    %808 = vmatprep.subr.mxu0 0.0
    %809 = vmatpush1.msra.mxu0 0.0
    %810 = vmatprep.subr.mxu0 0.0
    %811 = vmatpush1.msra.mxu0 0.0
    %812 = vmatprep.subr.mxu0 0.0
    %813 = vmatpush1.msra.mxu0 0.0
    %814 = vmatprep.subr.mxu0 0.0
    %815 = vmatpush1.msra.mxu0 0.0
    %816 = vmatprep.subr.mxu0 0.0
    %817 = vmatpush1.msra.mxu0 0.0
    %818 = vmatprep.subr.mxu0 0.0
    %819 = vmatpush1.msra.mxu0 0.0
    %820 = vmatprep.subr.mxu0 0.0
    %821 = vmatpush1.msra.mxu0 0.0
    %822 = vmatprep.subr.mxu0 0.0
    %823 = vmatpush1.msra.mxu0 0.0
    %824 = vmatprep.subr.mxu0 0.0
    %825 = vmatpush1.msra.mxu0 0.0
    %826 = vmatprep.subr.mxu0 0.0
    %827 = vmatpush1.msra.mxu0 %v180
    %828 = vmatprep.subr.mxu0 0.0
    %829 = vmatpush1.msra.mxu0 %v179
    %830 = vmatprep.subr.mxu0 0.0
    %831 = vmatpush1.msra.mxu0 %v178
    %832 = vmatprep.subr.mxu0 0.0
    %833 = vmatpush1.msra.mxu0 %v177
    %834 = vmatprep.subr.mxu0 0.0
    %835 = vmatpush2.msra.mxu0 0.0
    %836 = vmatprep.subr.mxu0 0.0
    %837 = vmatpush2.msra.mxu0 0.0
    %838 = vmatprep.subr.mxu0 0.0
    %839 = vmatpush2.msra.mxu0 0.0
    %840 = vmatprep.subr.mxu0 0.0
    %841 = vmatpush2.msra.mxu0 0.0
    %842 = vmatprep.subr.mxu0 0.0
    %843 = vmatpush2.msra.mxu0 0.0
    %844 = vmatprep.subr.mxu0 0.0
    %845 = vmatpush2.msra.mxu0 0.0
    %846 = vmatprep.subr.mxu0 0.0
    %847 = vmatpush2.msra.mxu0 0.0
    %848 = vmatprep.subr.mxu0 0.0
    %849 = vmatpush2.msra.mxu0 0.0
    %850 = vmatprep.subr.mxu0 0.0
    %851 = vmatpush2.msra.mxu0 0.0
    %852 = vmatprep.subr.mxu0 0.0
    %853 = vmatpush2.msra.mxu0 0.0
    %854 = vmatprep.subr.mxu0 0.0
    %855 = vmatpush2.msra.mxu0 0.0
    %856 = vmatprep.subr.mxu0 0.0
    %857 = vmatpush2.msra.mxu0 0.0
    %858 = vmatprep.subr.mxu0 0.0
    %859 = vmatpush2.msra.mxu0 0.0
    %860 = vmatprep.subr.mxu0 0.0
    %861 = vmatpush2.msra.mxu0 0.0
    %862 = vmatprep.subr.mxu0 0.0
    %863 = vmatpush2.msra.mxu0 0.0
    %864 = vmatprep.subr.mxu0 0.0
    %865 = vmatpush2.msra.mxu0 0.0
    %866 = vmatprep.mubr.f32.mxu0 0.0
    %867 = vmatmul.mubr.f32.gmra.mxu0 %v800
    %v868 = vpop.f32.mrf.mxu0
    %v869 = vadd.f32 0.0, %v868
    %v870 = vpop.f32.mrf.mxu0
    %871 = vdwg.mxu0
    %v872 = vadd.f32 %v169, %v869
    %v873 = vxor.u32 %v872, 2147483648
    %v874 = vmul.f32 %v873, 1.442695
    %v875 = vpow.pop %v874
    %v876 = vadd.f32 %v875, 1.0
    %v877 = vrcp.pop %v876
    %v878 = vmul.f32 1.0, %v877
    %v879 = vtanh.pop %v872
    %v880 = vmul.f32 %v878, %v787
    %882 = vrot.lane.b32.xlu0 %v879, 64
    %v883 = vpop.permute.xlu0 %882
    %v885 = vmul.f32 %v878, %v883
    %887 = vrot.lane.b32.xlu0 %v885, 32
    %v888 = vpop.permute.xlu0 %887
    %v890 = vadd.f32 %v880, %v888
    %v891 = vtanh.pop %v890
    %893 = vrot.lane.b32.xlu0 %v891, 64
    %v894 = vpop.permute.xlu0 %893
    %v896 = vmul.f32 %v878, %v894
    %898 = vrot.lane.b32.xlu0 %v896, 32
    %v899 = vpop.permute.xlu0 %898
    %s901 = scalar_lea.vmem [#allocation2], 48
    %902 = vst.msk [vmem:[%s901] sm:$0xff] %vm181, %v899
    %v903 = vsel %vm181, %v899, 0
    %905 = vmatprep.subr.mxu0 0.0
    %906 = vmatpush1.msra.mxu0 0.0
    %907 = vmatprep.subr.mxu0 0.0
    %908 = vmatpush1.msra.mxu0 0.0
    %909 = vmatprep.subr.mxu0 0.0
    %910 = vmatpush1.msra.mxu0 0.0
    %911 = vmatprep.subr.mxu0 0.0
    %912 = vmatpush1.msra.mxu0 0.0
    %913 = vmatprep.subr.mxu0 0.0
    %914 = vmatpush1.msra.mxu0 0.0
    %915 = vmatprep.subr.mxu0 0.0
    %916 = vmatpush1.msra.mxu0 0.0
    %917 = vmatprep.subr.mxu0 0.0
    %918 = vmatpush1.msra.mxu0 0.0
    %919 = vmatprep.subr.mxu0 0.0
    %920 = vmatpush1.msra.mxu0 0.0
    %921 = vmatprep.subr.mxu0 0.0
    %922 = vmatpush1.msra.mxu0 0.0
    %923 = vmatprep.subr.mxu0 0.0
    %924 = vmatpush1.msra.mxu0 0.0
    %925 = vmatprep.subr.mxu0 0.0
    %926 = vmatpush1.msra.mxu0 0.0
    %927 = vmatprep.subr.mxu0 0.0
    %928 = vmatpush1.msra.mxu0 0.0
    %929 = vmatprep.subr.mxu0 0.0
    %930 = vmatpush1.msra.mxu0 %v180
    %931 = vmatprep.subr.mxu0 0.0
    %932 = vmatpush1.msra.mxu0 %v179
    %933 = vmatprep.subr.mxu0 0.0
    %934 = vmatpush1.msra.mxu0 %v178
    %935 = vmatprep.subr.mxu0 0.0
    %936 = vmatpush1.msra.mxu0 %v177
    %937 = vmatprep.subr.mxu0 0.0
    %938 = vmatpush2.msra.mxu0 0.0
    %939 = vmatprep.subr.mxu0 0.0
    %940 = vmatpush2.msra.mxu0 0.0
    %941 = vmatprep.subr.mxu0 0.0
    %942 = vmatpush2.msra.mxu0 0.0
    %943 = vmatprep.subr.mxu0 0.0
    %944 = vmatpush2.msra.mxu0 0.0
    %945 = vmatprep.subr.mxu0 0.0
    %946 = vmatpush2.msra.mxu0 0.0
    %947 = vmatprep.subr.mxu0 0.0
    %948 = vmatpush2.msra.mxu0 0.0
    %949 = vmatprep.subr.mxu0 0.0
    %950 = vmatpush2.msra.mxu0 0.0
    %951 = vmatprep.subr.mxu0 0.0
    %952 = vmatpush2.msra.mxu0 0.0
    %953 = vmatprep.subr.mxu0 0.0
    %954 = vmatpush2.msra.mxu0 0.0
    %955 = vmatprep.subr.mxu0 0.0
    %956 = vmatpush2.msra.mxu0 0.0
    %957 = vmatprep.subr.mxu0 0.0
    %958 = vmatpush2.msra.mxu0 0.0
    %959 = vmatprep.subr.mxu0 0.0
    %960 = vmatpush2.msra.mxu0 0.0
    %961 = vmatprep.subr.mxu0 0.0
    %962 = vmatpush2.msra.mxu0 0.0
    %963 = vmatprep.subr.mxu0 0.0
    %964 = vmatpush2.msra.mxu0 0.0
    %965 = vmatprep.subr.mxu0 0.0
    %966 = vmatpush2.msra.mxu0 0.0
    %967 = vmatprep.subr.mxu0 0.0
    %968 = vmatpush2.msra.mxu0 0.0
    %969 = vmatprep.mubr.f32.mxu0 0.0
    %970 = vmatmul.mubr.f32.gmra.mxu0 %v903
    %v971 = vpop.f32.mrf.mxu0
    %v972 = vadd.f32 0.0, %v971
    %v973 = vpop.f32.mrf.mxu0
    %974 = vdwg.mxu0
    %v975 = vadd.f32 %v174, %v972
    %v976 = vxor.u32 %v975, 2147483648
    %v977 = vmul.f32 %v976, 1.442695
    %v978 = vpow.pop %v977
    %v979 = vadd.f32 %v978, 1.0
    %v980 = vrcp.pop %v979
    %v981 = vmul.f32 1.0, %v980
    %v982 = vtanh.pop %v975
    %v983 = vmul.f32 %v981, %v890
    %985 = vrot.lane.b32.xlu0 %v982, 64
    %v986 = vpop.permute.xlu0 %985
    %v988 = vmul.f32 %v981, %v986
    %990 = vrot.lane.b32.xlu0 %v988, 32
    %v991 = vpop.permute.xlu0 %990
    %v993 = vadd.f32 %v983, %v991
    %v994 = vtanh.pop %v993
    %996 = vrot.lane.b32.xlu0 %v994, 64
    %v997 = vpop.permute.xlu0 %996
    %v999 = vmul.f32 %v981, %v997
    %1001 = vrot.lane.b32.xlu0 %v999, 32
    %v1002 = vpop.permute.xlu0 %1001
    %s1004 = scalar_lea.vmem [#allocation2], 56
    %1005 = vst.msk [vmem:[%s1004] sm:$0xff] %vm181, %v1002
    %v1006 = vld [vmem:[#allocation2] sm:$0xff]
    %v1007 = vld [vmem:[#allocation2 + $0x8] sm:$0xff]
    %v1008 = vld [vmem:[#allocation2 + $0x10] sm:$0xff]
    %v1009 = vld [vmem:[#allocation2 + $0x18] sm:$0xff]
    %v1010 = vld [vmem:[#allocation2 + $0x20] sm:$0xff]
    %v1011 = vld [vmem:[#allocation2 + $0x28] sm:$0xff]
    %v1012 = vld [vmem:[#allocation2 + $0x30] sm:$0xff]
    %v1013 = vld [vmem:[#allocation2 + $0x38] sm:$0xff]
    %v1014 = vmax.f32 %v1006, 0.0
    %v1015 = vmax.f32 %v1007, 0.0
    %v1016 = vmax.f32 %v1008, 0.0
    %v1017 = vmax.f32 %v1009, 0.0
    %v1018 = vmax.f32 %v1010, 0.0
    %v1019 = vmax.f32 %v1011, 0.0
    %v1020 = vmax.f32 %v1012, 0.0
    %v1021 = vmax.f32 %v1013, 0.0
    %v1022 = vmin.f32 %v1014, 6.0
    %v1023 = vmin.f32 %v1015, 6.0
    %v1024 = vmin.f32 %v1016, 6.0
    %v1025 = vmin.f32 %v1017, 6.0
    %v1026 = vmin.f32 %v1018, 6.0
    %v1027 = vmin.f32 %v1019, 6.0
    %v1028 = vmin.f32 %v1020, 6.0
    %v1029 = vmin.f32 %v1021, 6.0
    %v1030 = vld [vmem:[%s3] sm:$0x1]
    %v1032 = vlaneseq
    %v1033 = vshrl.u32 %v1032, 7
    %v1034 = vsub.s32 0, %v1033
    %v1035 = vrot.slane %v1030, %v1034
    %v1037 = vmul.f32 %v1022, %v1035
    %v1038 = vmul.f32 %v1023, %v1035
    %v1039 = vmul.f32 %v1024, %v1035
    %v1040 = vmul.f32 %v1025, %v1035
    %v1041 = vmul.f32 %v1026, %v1035
    %v1042 = vmul.f32 %v1027, %v1035
    %v1043 = vmul.f32 %v1028, %v1035
    %v1044 = vmul.f32 %v1029, %v1035
    %v1045 = vsel %vm181, %v1037, 0.0
    %1046 = vadd.xlane.f32.xlu0 %v1045
    %v1047 = vpop.xlane.xlu0 %1046
    %v1048 = vsel %vm181, %v1038, 0.0
    %1049 = vadd.xlane.f32.xlu0 %v1048
    %v1050 = vpop.xlane.xlu0 %1049
    %v1051 = vsel %vm181, %v1039, 0.0
    %1052 = vadd.xlane.f32.xlu0 %v1051
    %v1053 = vpop.xlane.xlu0 %1052
    %v1054 = vsel %vm181, %v1040, 0.0
    %1055 = vadd.xlane.f32.xlu0 %v1054
    %v1056 = vpop.xlane.xlu0 %1055
    %v1057 = vsel %vm181, %v1041, 0.0
    %1058 = vadd.xlane.f32.xlu0 %v1057
    %v1059 = vpop.xlane.xlu0 %1058
    %v1060 = vsel %vm181, %v1042, 0.0
    %1061 = vadd.xlane.f32.xlu0 %v1060
    %v1062 = vpop.xlane.xlu0 %1061
    %v1063 = vsel %vm181, %v1043, 0.0
    %1064 = vadd.xlane.f32.xlu0 %v1063
    %v1065 = vpop.xlane.xlu0 %1064
    %v1066 = vsel %vm181, %v1044, 0.0
    %1067 = vadd.xlane.f32.xlu0 %v1066
    %v1068 = vpop.xlane.xlu0 %1067
    %v1077 = vlaneseq
    %v1078 = vand.u32 %v1077, 127
    %v1079 = vlaneseq
    %v1080 = vshrl.u32 %v1079, 7
    %v1081 = vsub.s32 %v1078, %v1080
    %v1082 = vrot.slane %v1047, %v1081
    %v1083 = vlaneseq
    %v1084 = vshrl.u32 %v1083, 7
    %v1085 = vsub.s32 %v1078, %v1084
    %v1086 = vrot.slane %v1050, %v1085
    %v1087 = vlaneseq
    %v1088 = vshrl.u32 %v1087, 7
    %v1089 = vsub.s32 %v1078, %v1088
    %v1090 = vrot.slane %v1053, %v1089
    %v1091 = vlaneseq
    %v1092 = vshrl.u32 %v1091, 7
    %v1093 = vsub.s32 %v1078, %v1092
    %v1094 = vrot.slane %v1056, %v1093
    %v1095 = vlaneseq
    %v1096 = vshrl.u32 %v1095, 7
    %v1097 = vsub.s32 %v1078, %v1096
    %v1098 = vrot.slane %v1059, %v1097
    %v1099 = vlaneseq
    %v1100 = vshrl.u32 %v1099, 7
    %v1101 = vsub.s32 %v1078, %v1100
    %v1102 = vrot.slane %v1062, %v1101
    %v1103 = vlaneseq
    %v1104 = vshrl.u32 %v1103, 7
    %v1105 = vsub.s32 %v1078, %v1104
    %v1106 = vrot.slane %v1065, %v1105
    %v1107 = vlaneseq
    %v1108 = vshrl.u32 %v1107, 7
    %v1109 = vsub.s32 %v1078, %v1108
    %v1110 = vrot.slane %v1068, %v1109
    %vm1111 = vcmask 1041409
    %v1112 = vsel %vm1111, %v1086, %v1082
    %vm1113 = vcmask 1042434
    %v1114 = vsel %vm1113, %v1090, %v1112
    %vm1115 = vcmask 1043459
    %v1116 = vsel %vm1115, %v1094, %v1114
    %vm1117 = vcmask 1044484
    %v1118 = vsel %vm1117, %v1098, %v1116
    %vm1119 = vcmask 1045509
    %v1120 = vsel %vm1119, %v1102, %v1118
    %vm1121 = vcmask 1046534
    %v1122 = vsel %vm1121, %v1106, %v1120
    %vm1123 = vcmask 1047559
    %v1124 = vsel %vm1123, %v1110, %v1122
    %vm1126 = vcmask 64512
    %1127 = vst.msk [vmem:[#allocation3] sm:$0xff] %vm1126, %v1124
    // Predicated region
    $region18: #{tpu_custom_call.1} parent=1 // pred_check
      _
    $region19: #{tpu_custom_call.1} parent=1 // pred_check_branch
      %1129 = sbr.rel (0) target = $region21
    $region20: #{tpu_custom_call.1} parent=1 // pred_region
      %s1131 = ssub.s32 128, 128
      %1132 = vsyncadd [#allocation4], %s1131
      %s1134 = sshll.u32 [#allocation3], 4
      %s1135 = int_to_ptr.vmem [resolvable:$true] %s1134
      %1137 = dma.vmem_to_hbm [thread:$0]  %s1135, 128, %s4, [#allocation4]
    $region21: #{tpu_custom_call.1} parent=1 // pred_fallthru
      _
    // Predicated region
    $region22: #{tpu_custom_call.1} parent=1 // pred_check
      _
    $region23: #{tpu_custom_call.1} parent=1 // pred_check_branch
      %1139 = sbr.rel (0) target = $region25
    $region24: #{tpu_custom_call.1} parent=1 // pred_region
      %1140 = dma.done [#allocation4], 128
    $region25: #{tpu_custom_call.1} parent=1 // pred_fallthru
      _
    %1141 = vsyncpa [#allocation4], 1

</llo_original>
